<compile_context>
chip_gen: v7x
topology: tpu7x:2x2x1
jax: 0.10.0
libtpu: 0.0.40
codegen_flags: <defaults>
</compile_context>

<pallas_src>
import functools

import jax
import jax.numpy as jnp
from jax.experimental import pallas as pl
from jax.experimental.pallas import tpu as pltpu


# ---------------------------------------------------------------------------
# Pallas kernels
# ---------------------------------------------------------------------------
def _matmul_bias_kernel(x_ref, w_ref, b_ref, o_ref, *, relu):
    """One (TM, K) x (K, N) tile: MXU matmul, f32 accumulate, + bias, ReLU."""
    acc = jnp.dot(x_ref[...], w_ref[...], preferred_element_type=jnp.float32)
    acc = acc + b_ref[...]                      # (1, N) f32, broadcasts over rows
    if relu:
        acc = jnp.maximum(acc, 0.0)
    o_ref[...] = acc.astype(o_ref.dtype)


def pallas_linear(x, w, b, *, relu, out_dtype, tm_max=512):
    """y = relu?(x @ w + b).  M-tiled grid; w and b stay resident across it."""
    M, K = x.shape
    Kw, N = w.shape
    assert K == Kw
    b2 = b.reshape(1, N).astype(jnp.float32)

    tm = M if M <= tm_max else tm_max           # small M -> single full block
    grid_m = pl.cdiv(M, tm)

    bytes_accessed = (M * K * x.dtype.itemsize + K * N * w.dtype.itemsize
                      + N * 4 + M * N * jnp.dtype(out_dtype).itemsize)
    cost = pl.CostEstimate(flops=2 * M * K * N, transcendentals=0,
                           bytes_accessed=bytes_accessed)

    return pl.pallas_call(
        functools.partial(_matmul_bias_kernel, relu=relu),
        out_shape=jax.ShapeDtypeStruct((M, N), out_dtype),
        grid_spec=pltpu.PrefetchScalarGridSpec(
            num_scalar_prefetch=0,
            grid=(grid_m,),
            in_specs=[pl.BlockSpec((tm, K), lambda i: (i, 0)),
                      pl.BlockSpec((K, N), lambda i: (0, 0)),
                      pl.BlockSpec((1, N), lambda i: (0, 0))],
            out_specs=pl.BlockSpec((tm, N), lambda i: (i, 0))),
        compiler_params=pltpu.CompilerParams(
            dimension_semantics=("parallel",)),
        cost_estimate=cost,
    )(x, w, b2)


def _duel_head_kernel(h_ref, w_ref, b_ref, o_ref, *, num_actions):
    """Fused adv/val head + dueling combine: one matmul, write final Q values."""
    acc = jnp.dot(h_ref[...], w_ref[...], preferred_element_type=jnp.float32)
    acc = acc + b_ref[...]                      # (B, A+1): [adv | val]
    adv = acc[:, :num_actions]
    val = acc[:, num_actions:num_actions + 1]
    # torch: val + adv - adv.mean()  (scalar mean over the WHOLE adv tensor)
    o_ref[...] = (val + adv - jnp.mean(adv)).astype(o_ref.dtype)


def pallas_duel_head(h, w, b, num_actions):
    B = h.shape[0]
    vmem = pl.BlockSpec(memory_space=pltpu.MemorySpace.VMEM)
    return pl.pallas_call(
        functools.partial(_duel_head_kernel, num_actions=num_actions),
        out_shape=jax.ShapeDtypeStruct((B, num_actions), jnp.float32),
        in_specs=[vmem, vmem, vmem],
        out_specs=vmem,
    )(h, w, b.reshape(1, -1).astype(jnp.float32))


# ---------------------------------------------------------------------------
# Conv via NHWC im2col (lane-dense XLA glue) + Pallas matmul (hot path)
# ---------------------------------------------------------------------------
def im2col_nhwc(x, kh, kw, stride):
    """x: (B, H, W, C) -> (B*OH*OW, KH*KW*C); patch inner order (kh, kw, C)."""
    B, H, W, C = x.shape
    oh = (H - kh) // stride + 1
    ow = (W - kw) // stride + 1
    cols = []
    for i in range(kh):
        for j in range(kw):
            cols.append(x[:, i:i + stride * oh:stride, j:j + stride * ow:stride, :])
    p = jnp.stack(cols, axis=3)                  # (B, oh, ow, kh*kw, C)
    return p.reshape(B * oh * ow, kh * kw * C), oh, ow


def conv2d_nhwc(x, w_hwio, b, stride, *, relu):
    """x: (B,H,W,C); w_hwio: (KH,KW,C,OC); b: (OC,) -> (B,OH,OW,OC) bf16."""
    # TODO(synk): replace HBM-materialized im2col with in-kernel window
    # accumulation (per-tap strided slices into a VMEM f32 accumulator) to
    # remove conv1's patch-inflation HBM round-trip at large batch.
    KH, KW, C, OC = w_hwio.shape
    patches, oh, ow = im2col_nhwc(x, KH, KW, stride)
    out = pallas_linear(patches, w_hwio.reshape(KH * KW * C, OC), b,
                        relu=relu, out_dtype=jnp.bfloat16)     # (B*oh*ow, OC)
    return out.reshape(x.shape[0], oh, ow, OC)


# ---------------------------------------------------------------------------
# Parameters: torch-layout init, then one-time repack for the NHWC/fused kernels
# ---------------------------------------------------------------------------
def init_params(key, in_channels, num_actions, feature_size):
    keys = jax.random.split(key, 14)

    def u(k, shape, fan_in):
        bound = 1.0 / jnp.sqrt(jnp.float32(fan_in))
        return jax.random.uniform(k, shape, jnp.float32, -bound, bound)

    p = {}
    p["c1_w"] = u(keys[0], (32, in_channels, 8, 8), in_channels * 8 * 8)
    p["c1_b"] = u(keys[1], (32,), in_channels * 8 * 8)
    p["c2_w"] = u(keys[2], (64, 32, 4, 4), 32 * 4 * 4)
    p["c2_b"] = u(keys[3], (64,), 32 * 4 * 4)
    p["c3_w"] = u(keys[4], (64, 64, 3, 3), 64 * 3 * 3)
    p["c3_b"] = u(keys[5], (64,), 64 * 3 * 3)
    p["a1_w"] = u(keys[6], (feature_size, 512), feature_size)   # (in, out) layout
    p["a1_b"] = u(keys[7], (512,), feature_size)
    p["a2_w"] = u(keys[8], (512, num_actions), 512)
    p["a2_b"] = u(keys[9], (num_actions,), 512)
    p["v1_w"] = u(keys[10], (feature_size, 512), feature_size)
    p["v1_b"] = u(keys[11], (512,), feature_size)
    p["v2_w"] = u(keys[12], (512, 1), 512)
    p["v2_b"] = u(keys[13], (1,), 512)
    return p


def _chw_to_hwc_perm(c, h, w):
    """perm[k] = torch (C,H,W)-flatten index of the feature at NHWC position k."""
    return jnp.arange(c * h * w).reshape(c, h, w).transpose(1, 2, 0).reshape(-1)


def prepare_params(p, num_actions, conv_out_hw):
    """One-time repack: NHWC conv weights, NHWC-permuted + fused FC weights, bf16."""
    h3, w3 = conv_out_hw
    perm = _chw_to_hwc_perm(64, h3, w3)
    q = {}
    for n in (1, 2, 3):
        # (OC, C, KH, KW) -> (KH, KW, C, OC), matching im2col's (kh, kw, C) order
        q[f"c{n}_w"] = jnp.transpose(p[f"c{n}_w"], (2, 3, 1, 0)).astype(jnp.bfloat16)
        q[f"c{n}_b"] = p[f"c{n}_b"].astype(jnp.float32)

    # Fused first FC layer of both branches: (feature, 1024) = [adv1 | val1],
    # rows permuted so the NHWC flatten matches torch's NCHW .view flatten.
    q["fc1_w"] = jnp.concatenate([p["a1_w"][perm], p["v1_w"][perm]],
                                 axis=1).astype(jnp.bfloat16)
    q["fc1_b"] = jnp.concatenate([p["a1_b"], p["v1_b"]]).astype(jnp.float32)

    # Fused head: block-diagonal (1024, A+1); columns [0:A] = adv, [A] = val.
    wh = jnp.zeros((1024, num_actions + 1), jnp.float32)
    wh = wh.at[:512, :num_actions].set(p["a2_w"])
    wh = wh.at[512:, num_actions:].set(p["v2_w"])
    q["head_w"] = wh.astype(jnp.bfloat16)
    q["head_b"] = jnp.concatenate([p["a2_b"], p["v2_b"]]).astype(jnp.float32)
    return q


# ---------------------------------------------------------------------------
# Full forward pass (matches DQN_conv_duel.forward)
# ---------------------------------------------------------------------------
def dqn_conv_duel_forward(params, x, num_actions):
    # single layout change: NCHW (torch) -> NHWC, bf16 inputs for the MXU
    h = jnp.transpose(x, (0, 2, 3, 1)).astype(jnp.bfloat16)
    h = conv2d_nhwc(h, params["c1_w"], params["c1_b"], stride=4, relu=True)
    h = conv2d_nhwc(h, params["c2_w"], params["c2_b"], stride=2, relu=True)
    h = conv2d_nhwc(h, params["c3_w"], params["c3_b"], stride=1, relu=True)
    feat = h.reshape(x.shape[0], -1)            # NHWC flatten; fc1 rows pre-permuted

    # fused advantage|value hidden layer: (B, 1024), ReLU
    hid = pallas_linear(feat, params["fc1_w"], params["fc1_b"],
                        relu=True, out_dtype=jnp.bfloat16)
    # fused heads + dueling combine: val + adv - adv.mean()
    return pallas_duel_head(hid, params["head_w"], params["head_b"], num_actions)


if __name__ == "__main__":
    # Small shapes consistent with the conv stack (kernel 8/4/3, stride 4/2/1):
    # H=W=36 -> 8 -> 3 -> 1, so feature_size = 64 * 1 * 1 = 64.
    B, C, H, W = 2, 4, 36, 36
    num_actions = 6
    h1 = (H - 8) // 4 + 1
    h2 = (h1 - 4) // 2 + 1
    h3 = (h2 - 3) // 1 + 1
    feature_size = 64 * h3 * h3

    key = jax.random.PRNGKey(0)
    kx, kp = jax.random.split(key)
    x = jax.random.normal(kx, (B, C, H, W), jnp.float32)
    params = prepare_params(init_params(kp, C, num_actions, feature_size),
                            num_actions, (h3, h3))

    fwd = jax.jit(functools.partial(dqn_conv_duel_forward, num_actions=num_actions))
    out = jax.block_until_ready(fwd(params, x))
    assert out.shape == (B, num_actions)
    assert out.dtype == jnp.float32
    print("KERNEL_OK")
</pallas_src>

<mosaic_0001>
module attributes {stable_mosaic.version = 11 : i64} {
  func.func @_matmul_bias_kernel(%arg0: i32, %arg1: memref<128x256xbf16, #tpu.memory_space<vmem>>, %arg2: memref<256x32xbf16, #tpu.memory_space<vmem>>, %arg3: memref<1x32xf32, #tpu.memory_space<vmem>>, %arg4: memref<128x32xbf16, #tpu.memory_space<vmem>>) attributes {dimension_semantics = [#tpu.dimension_semantics<parallel>], iteration_bounds = array<i64: 1>, scalar_prefetch = 0 : i64, scratch_operands = 0 : i64, tpu.core_type = #tpu.core_type<tc>, window_params = [{transform_indices = @transform_0, window_bounds = array<i64: 128, 256>}, {pipeline_mode = #tpu.pipeline_mode<synchronous>, transform_indices = @transform_1, window_bounds = array<i64: 256, 32>}, {pipeline_mode = #tpu.pipeline_mode<synchronous>, transform_indices = @transform_2, window_bounds = array<i64: 1, 32>}, {transform_indices = @transform_3, window_bounds = array<i64: 128, 32>}]} {
    %c0 = arith.constant 0 : index
    %c0_0 = arith.constant 0 : index
    %0 = vector.load %arg1[%c0, %c0_0] : memref<128x256xbf16, #tpu.memory_space<vmem>>, vector<128x256xbf16>
    %c0_1 = arith.constant 0 : index
    %c0_2 = arith.constant 0 : index
    %1 = vector.load %arg2[%c0_1, %c0_2] : memref<256x32xbf16, #tpu.memory_space<vmem>>, vector<256x32xbf16>
    %cst = arith.constant dense<0.000000e+00> : vector<128x32xf32>
    %2 = tpu.matmul %0, %1, %cst {dimension_numbers = #tpu.dot_dimension_numbers<[1], [0], [0], [1], [0, 0, 1, 1], [], []>} : vector<128x256xbf16>, vector<256x32xbf16>, vector<128x32xf32> -> vector<128x32xf32>
    %c0_3 = arith.constant 0 : index
    %c0_4 = arith.constant 0 : index
    %3 = vector.load %arg3[%c0_3, %c0_4] : memref<1x32xf32, #tpu.memory_space<vmem>>, vector<1x32xf32>
    %4 = vector.broadcast %3 : vector<1x32xf32> to vector<128x32xf32>
    %5 = arith.addf %2, %4 : vector<128x32xf32>
    %cst_5 = arith.constant 0.000000e+00 : f32
    %6 = vector.broadcast %cst_5 : f32 to vector<128x32xf32>
    %7 = arith.maximumf %5, %6 : vector<128x32xf32>
    %8 = arith.truncf %7 : vector<128x32xf32> to vector<128x32xbf16>
    %c0_6 = arith.constant 0 : index
    %c0_7 = arith.constant 0 : index
    %9 = vector.load %arg4[%c0_6, %c0_7] : memref<128x32xbf16, #tpu.memory_space<vmem>>, vector<128x32xbf16>
    tpu.vector_store %arg4[%c0_6, %c0_7], %8 {strides = array<i32>} : memref<128x32xbf16, #tpu.memory_space<vmem>>, vector<128x32xbf16>,
    return
  }
  func.func @transform_0(%arg0: i32) -> (i32, i32) {
    %c0_i32 = arith.constant 0 : i32
    %c0_i32_0 = arith.constant 0 : i32
    return %arg0, %c0_i32 : i32, i32
  }
  func.func @transform_1(%arg0: i32) -> (i32, i32) {
    %c0_i32 = arith.constant 0 : i32
    %c0_i32_0 = arith.constant 0 : i32
    %c0_i32_1 = arith.constant 0 : i32
    return %c0_i32, %c0_i32_0 : i32, i32
  }
  func.func @transform_2(%arg0: i32) -> (i32, i32) {
    %c0_i32 = arith.constant 0 : i32
    %c0_i32_0 = arith.constant 0 : i32
    %c0_i32_1 = arith.constant 0 : i32
    return %c0_i32, %c0_i32_0 : i32, i32
  }
  func.func @transform_3(%arg0: i32) -> (i32, i32) {
    %c0_i32 = arith.constant 0 : i32
    %c0_i32_0 = arith.constant 0 : i32
    return %arg0, %c0_i32 : i32, i32
  }
}

module attributes {stable_mosaic.version = 11 : i64} {
  func.func @_matmul_bias_kernel(%arg0: i32, %arg1: memref<18x512xbf16, #tpu.memory_space<vmem>>, %arg2: memref<512x64xbf16, #tpu.memory_space<vmem>>, %arg3: memref<1x64xf32, #tpu.memory_space<vmem>>, %arg4: memref<18x64xbf16, #tpu.memory_space<vmem>>) attributes {dimension_semantics = [#tpu.dimension_semantics<parallel>], iteration_bounds = array<i64: 1>, scalar_prefetch = 0 : i64, scratch_operands = 0 : i64, tpu.core_type = #tpu.core_type<tc>, window_params = [{transform_indices = @transform_0, window_bounds = array<i64: 18, 512>}, {pipeline_mode = #tpu.pipeline_mode<synchronous>, transform_indices = @transform_1, window_bounds = array<i64: 512, 64>}, {pipeline_mode = #tpu.pipeline_mode<synchronous>, transform_indices = @transform_2, window_bounds = array<i64: 1, 64>}, {transform_indices = @transform_3, window_bounds = array<i64: 18, 64>}]} {
    %c0 = arith.constant 0 : index
    %c0_0 = arith.constant 0 : index
    %0 = vector.load %arg1[%c0, %c0_0] : memref<18x512xbf16, #tpu.memory_space<vmem>>, vector<18x512xbf16>
    %c0_1 = arith.constant 0 : index
    %c0_2 = arith.constant 0 : index
    %1 = vector.load %arg2[%c0_1, %c0_2] : memref<512x64xbf16, #tpu.memory_space<vmem>>, vector<512x64xbf16>
    %cst = arith.constant dense<0.000000e+00> : vector<18x64xf32>
    %2 = tpu.matmul %0, %1, %cst {dimension_numbers = #tpu.dot_dimension_numbers<[1], [0], [0], [1], [0, 0, 1, 1], [], []>} : vector<18x512xbf16>, vector<512x64xbf16>, vector<18x64xf32> -> vector<18x64xf32>
    %c0_3 = arith.constant 0 : index
    %c0_4 = arith.constant 0 : index
    %3 = vector.load %arg3[%c0_3, %c0_4] : memref<1x64xf32, #tpu.memory_space<vmem>>, vector<1x64xf32>
    %4 = vector.broadcast %3 : vector<1x64xf32> to vector<18x64xf32>
    %5 = arith.addf %2, %4 : vector<18x64xf32>
    %cst_5 = arith.constant 0.000000e+00 : f32
    %6 = vector.broadcast %cst_5 : f32 to vector<18x64xf32>
    %7 = arith.maximumf %5, %6 : vector<18x64xf32>
    %8 = arith.truncf %7 : vector<18x64xf32> to vector<18x64xbf16>
    %c0_6 = arith.constant 0 : index
    %c0_7 = arith.constant 0 : index
    %9 = vector.load %arg4[%c0_6, %c0_7] : memref<18x64xbf16, #tpu.memory_space<vmem>>, vector<18x64xbf16>
    tpu.vector_store %arg4[%c0_6, %c0_7], %8 {strides = array<i32>} : memref<18x64xbf16, #tpu.memory_space<vmem>>, vector<18x64xbf16>,
    return
  }
  func.func @transform_0(%arg0: i32) -> (i32, i32) {
    %c0_i32 = arith.constant 0 : i32
    %c0_i32_0 = arith.constant 0 : i32
    return %arg0, %c0_i32 : i32, i32
  }
  func.func @transform_1(%arg0: i32) -> (i32, i32) {
    %c0_i32 = arith.constant 0 : i32
    %c0_i32_0 = arith.constant 0 : i32
    %c0_i32_1 = arith.constant 0 : i32
    return %c0_i32, %c0_i32_0 : i32, i32
  }
  func.func @transform_2(%arg0: i32) -> (i32, i32) {
    %c0_i32 = arith.constant 0 : i32
    %c0_i32_0 = arith.constant 0 : i32
    %c0_i32_1 = arith.constant 0 : i32
    return %c0_i32, %c0_i32_0 : i32, i32
  }
  func.func @transform_3(%arg0: i32) -> (i32, i32) {
    %c0_i32 = arith.constant 0 : i32
    %c0_i32_0 = arith.constant 0 : i32
    return %arg0, %c0_i32 : i32, i32
  }
}

module attributes {stable_mosaic.version = 11 : i64} {
  func.func @_matmul_bias_kernel(%arg0: i32, %arg1: memref<2x576xbf16, #tpu.memory_space<vmem>>, %arg2: memref<576x64xbf16, #tpu.memory_space<vmem>>, %arg3: memref<1x64xf32, #tpu.memory_space<vmem>>, %arg4: memref<2x64xbf16, #tpu.memory_space<vmem>>) attributes {dimension_semantics = [#tpu.dimension_semantics<parallel>], iteration_bounds = array<i64: 1>, scalar_prefetch = 0 : i64, scratch_operands = 0 : i64, tpu.core_type = #tpu.core_type<tc>, window_params = [{transform_indices = @transform_0, window_bounds = array<i64: 2, 576>}, {pipeline_mode = #tpu.pipeline_mode<synchronous>, transform_indices = @transform_1, window_bounds = array<i64: 576, 64>}, {pipeline_mode = #tpu.pipeline_mode<synchronous>, transform_indices = @transform_2, window_bounds = array<i64: 1, 64>}, {transform_indices = @transform_3, window_bounds = array<i64: 2, 64>}]} {
    %c0 = arith.constant 0 : index
    %c0_0 = arith.constant 0 : index
    %0 = vector.load %arg1[%c0, %c0_0] : memref<2x576xbf16, #tpu.memory_space<vmem>>, vector<2x576xbf16>
    %c0_1 = arith.constant 0 : index
    %c0_2 = arith.constant 0 : index
    %1 = vector.load %arg2[%c0_1, %c0_2] : memref<576x64xbf16, #tpu.memory_space<vmem>>, vector<576x64xbf16>
    %cst = arith.constant dense<0.000000e+00> : vector<2x64xf32>
    %2 = tpu.matmul %0, %1, %cst {dimension_numbers = #tpu.dot_dimension_numbers<[1], [0], [0], [1], [0, 0, 1, 1], [], []>} : vector<2x576xbf16>, vector<576x64xbf16>, vector<2x64xf32> -> vector<2x64xf32>
    %c0_3 = arith.constant 0 : index
    %c0_4 = arith.constant 0 : index
    %3 = vector.load %arg3[%c0_3, %c0_4] : memref<1x64xf32, #tpu.memory_space<vmem>>, vector<1x64xf32>
    %4 = vector.broadcast %3 : vector<1x64xf32> to vector<2x64xf32>
    %5 = arith.addf %2, %4 : vector<2x64xf32>
    %cst_5 = arith.constant 0.000000e+00 : f32
    %6 = vector.broadcast %cst_5 : f32 to vector<2x64xf32>
    %7 = arith.maximumf %5, %6 : vector<2x64xf32>
    %8 = arith.truncf %7 : vector<2x64xf32> to vector<2x64xbf16>
    %c0_6 = arith.constant 0 : index
    %c0_7 = arith.constant 0 : index
    %9 = vector.load %arg4[%c0_6, %c0_7] : memref<2x64xbf16, #tpu.memory_space<vmem>>, vector<2x64xbf16>
    tpu.vector_store %arg4[%c0_6, %c0_7], %8 {strides = array<i32>} : memref<2x64xbf16, #tpu.memory_space<vmem>>, vector<2x64xbf16>,
    return
  }
  func.func @transform_0(%arg0: i32) -> (i32, i32) {
    %c0_i32 = arith.constant 0 : i32
    %c0_i32_0 = arith.constant 0 : i32
    return %arg0, %c0_i32 : i32, i32
  }
  func.func @transform_1(%arg0: i32) -> (i32, i32) {
    %c0_i32 = arith.constant 0 : i32
    %c0_i32_0 = arith.constant 0 : i32
    %c0_i32_1 = arith.constant 0 : i32
    return %c0_i32, %c0_i32_0 : i32, i32
  }
  func.func @transform_2(%arg0: i32) -> (i32, i32) {
    %c0_i32 = arith.constant 0 : i32
    %c0_i32_0 = arith.constant 0 : i32
    %c0_i32_1 = arith.constant 0 : i32
    return %c0_i32, %c0_i32_0 : i32, i32
  }
  func.func @transform_3(%arg0: i32) -> (i32, i32) {
    %c0_i32 = arith.constant 0 : i32
    %c0_i32_0 = arith.constant 0 : i32
    return %arg0, %c0_i32 : i32, i32
  }
}

module attributes {stable_mosaic.version = 11 : i64} {
  func.func @_matmul_bias_kernel(%arg0: i32, %arg1: memref<2x64xbf16, #tpu.memory_space<vmem>>, %arg2: memref<64x1024xbf16, #tpu.memory_space<vmem>>, %arg3: memref<1x1024xf32, #tpu.memory_space<vmem>>, %arg4: memref<2x1024xbf16, #tpu.memory_space<vmem>>) attributes {dimension_semantics = [#tpu.dimension_semantics<parallel>], iteration_bounds = array<i64: 1>, scalar_prefetch = 0 : i64, scratch_operands = 0 : i64, tpu.core_type = #tpu.core_type<tc>, window_params = [{transform_indices = @transform_0, window_bounds = array<i64: 2, 64>}, {pipeline_mode = #tpu.pipeline_mode<synchronous>, transform_indices = @transform_1, window_bounds = array<i64: 64, 1024>}, {pipeline_mode = #tpu.pipeline_mode<synchronous>, transform_indices = @transform_2, window_bounds = array<i64: 1, 1024>}, {transform_indices = @transform_3, window_bounds = array<i64: 2, 1024>}]} {
    %c0 = arith.constant 0 : index
    %c0_0 = arith.constant 0 : index
    %0 = vector.load %arg1[%c0, %c0_0] : memref<2x64xbf16, #tpu.memory_space<vmem>>, vector<2x64xbf16>
    %c0_1 = arith.constant 0 : index
    %c0_2 = arith.constant 0 : index
    %1 = vector.load %arg2[%c0_1, %c0_2] : memref<64x1024xbf16, #tpu.memory_space<vmem>>, vector<64x1024xbf16>
    %cst = arith.constant dense<0.000000e+00> : vector<2x1024xf32>
    %2 = tpu.matmul %0, %1, %cst {dimension_numbers = #tpu.dot_dimension_numbers<[1], [0], [0], [1], [0, 0, 1, 1], [], []>} : vector<2x64xbf16>, vector<64x1024xbf16>, vector<2x1024xf32> -> vector<2x1024xf32>
    %c0_3 = arith.constant 0 : index
    %c0_4 = arith.constant 0 : index
    %3 = vector.load %arg3[%c0_3, %c0_4] : memref<1x1024xf32, #tpu.memory_space<vmem>>, vector<1x1024xf32>
    %4 = vector.broadcast %3 : vector<1x1024xf32> to vector<2x1024xf32>
    %5 = arith.addf %2, %4 : vector<2x1024xf32>
    %cst_5 = arith.constant 0.000000e+00 : f32
    %6 = vector.broadcast %cst_5 : f32 to vector<2x1024xf32>
    %7 = arith.maximumf %5, %6 : vector<2x1024xf32>
    %8 = arith.truncf %7 : vector<2x1024xf32> to vector<2x1024xbf16>
    %c0_6 = arith.constant 0 : index
    %c0_7 = arith.constant 0 : index
    %9 = vector.load %arg4[%c0_6, %c0_7] : memref<2x1024xbf16, #tpu.memory_space<vmem>>, vector<2x1024xbf16>
    tpu.vector_store %arg4[%c0_6, %c0_7], %8 {strides = array<i32>} : memref<2x1024xbf16, #tpu.memory_space<vmem>>, vector<2x1024xbf16>,
    return
  }
  func.func @transform_0(%arg0: i32) -> (i32, i32) {
    %c0_i32 = arith.constant 0 : i32
    %c0_i32_0 = arith.constant 0 : i32
    return %arg0, %c0_i32 : i32, i32
  }
  func.func @transform_1(%arg0: i32) -> (i32, i32) {
    %c0_i32 = arith.constant 0 : i32
    %c0_i32_0 = arith.constant 0 : i32
    %c0_i32_1 = arith.constant 0 : i32
    return %c0_i32, %c0_i32_0 : i32, i32
  }
  func.func @transform_2(%arg0: i32) -> (i32, i32) {
    %c0_i32 = arith.constant 0 : i32
    %c0_i32_0 = arith.constant 0 : i32
    %c0_i32_1 = arith.constant 0 : i32
    return %c0_i32, %c0_i32_0 : i32, i32
  }
  func.func @transform_3(%arg0: i32) -> (i32, i32) {
    %c0_i32 = arith.constant 0 : i32
    %c0_i32_0 = arith.constant 0 : i32
    return %arg0, %c0_i32 : i32, i32
  }
}

module attributes {stable_mosaic.version = 11 : i64} {
  func.func @_duel_head_kernel(%arg0: memref<2x1024xbf16, #tpu.memory_space<vmem>>, %arg1: memref<1024x7xbf16, #tpu.memory_space<vmem>>, %arg2: memref<1x7xf32, #tpu.memory_space<vmem>>, %arg3: memref<2x6xf32, #tpu.memory_space<vmem>>) attributes {dimension_semantics = [], scalar_prefetch = 0 : i64, scratch_operands = 0 : i64, tpu.core_type = #tpu.core_type<tc>} {
    %c0 = arith.constant 0 : index
    %c0_0 = arith.constant 0 : index
    %0 = vector.load %arg0[%c0, %c0_0] : memref<2x1024xbf16, #tpu.memory_space<vmem>>, vector<2x1024xbf16>
    %c0_1 = arith.constant 0 : index
    %c0_2 = arith.constant 0 : index
    %1 = vector.load %arg1[%c0_1, %c0_2] : memref<1024x7xbf16, #tpu.memory_space<vmem>>, vector<1024x7xbf16>
    %cst = arith.constant dense<0.000000e+00> : vector<2x7xf32>
    %2 = tpu.matmul %0, %1, %cst {dimension_numbers = #tpu.dot_dimension_numbers<[1], [0], [0], [1], [0, 0, 1, 1], [], []>} : vector<2x1024xbf16>, vector<1024x7xbf16>, vector<2x7xf32> -> vector<2x7xf32>
    %c0_3 = arith.constant 0 : index
    %c0_4 = arith.constant 0 : index
    %3 = vector.load %arg2[%c0_3, %c0_4] : memref<1x7xf32, #tpu.memory_space<vmem>>, vector<1x7xf32>
    %4 = vector.broadcast %3 : vector<1x7xf32> to vector<2x7xf32>
    %5 = arith.addf %2, %4 : vector<2x7xf32>
    %6 = vector.extract_strided_slice %5 {offsets = [0, 0], sizes = [2, 6], strides = [1, 1]} : vector<2x7xf32> to vector<2x6xf32>
    %7 = vector.extract_strided_slice %5 {offsets = [0, 6], sizes = [2, 1], strides = [1, 1]} : vector<2x7xf32> to vector<2x1xf32>
    %8 = vector.broadcast %7 : vector<2x1xf32> to vector<2x6xf32>
    %9 = arith.addf %8, %6 : vector<2x6xf32>
    %10 = vector.shape_cast %6 : vector<2x6xf32> to vector<1x2x6xf32>
    %cst_5 = arith.constant dense<0.000000e+00> : vector<1xf32>
    %11 = vector.multi_reduction <add>, %10, %cst_5 [1, 2] : vector<1x2x6xf32> to vector<1xf32>
    %12 = vector.shape_cast %11 : vector<1xf32> to vector<1x1x1xf32>
    %13 = vector.extract %12[0, 0, 0] : f32 from vector<1x1x1xf32>
    %cst_6 = arith.constant 1.200000e+01 : f32
    %14 = arith.divf %13, %cst_6 : f32
    %15 = vector.broadcast %14 : f32 to vector<2x6xf32>
    %16 = arith.subf %9, %15 : vector<2x6xf32>
    %c0_7 = arith.constant 0 : index
    %c0_8 = arith.constant 0 : index
    %17 = vector.load %arg3[%c0_7, %c0_8] : memref<2x6xf32, #tpu.memory_space<vmem>>, vector<2x6xf32>
    tpu.vector_store %arg3[%c0_7, %c0_8], %16 {strides = array<i32>} : memref<2x6xf32, #tpu.memory_space<vmem>>, vector<2x6xf32>,
    return
  }
}

</mosaic_0001>

<llo_original>
// kernel: dqn_conv_duel_forward.5
$region0: #{dqn_conv_duel_forward.5}
  #allocation0 [shape = 'u32[]', space=smem, size = 0x4, offset = 0x4, fixed_abs, tag = 'smem constant byte address 0x4 - core index']
  #allocation1 [shape = 'u32[144,128]{1,0:T(1,128)}', space=vmem, size = 0x12000, scoped, tag = 'internal scratch']
  %s0 = inlined_call_operand.vmem [shape: bf16[128,256], index: 0, kind: input, shape index: {}]
  %s1 = inlined_call_operand.vmem [shape: bf16[256,32], index: 1, kind: input, shape index: {}]
  %s2 = inlined_call_operand.vmem [shape: f32[1,32], index: 2, kind: input, shape index: {}]
  %s3 = inlined_call_operand.vmem [shape: bf16[128,32], index: 3, kind: output, shape index: {}]
  %s4 = sld [smem:[#allocation0]]
  $region22: #{dqn_conv_duel_forward.5} parent=0
    _
  %s6 = ssub.s32 1, %s4
  %s7 = scalar_select 0, %s6, %s4
  // Predicated region
  $region2: #{dqn_conv_duel_forward.5} parent=0 // pred_check
    _
  $region3: #{dqn_conv_duel_forward.5} parent=0 // pred_check_branch
    %9 = sbr.rel (0) target = $region5
  $region4: #{dqn_conv_duel_forward.5} parent=0 // pred_region
    _
  $region5: #{dqn_conv_duel_forward.5} parent=0 // pred_fallthru
    _
  // Predicated region
  $region6: #{dqn_conv_duel_forward.5} parent=0 // pred_check
    _
  $region7: #{dqn_conv_duel_forward.5} parent=0 // pred_check_branch
    %11 = sbr.rel (0) target = $region9
  $region8: #{dqn_conv_duel_forward.5} parent=0 // pred_region
    _
  $region9: #{dqn_conv_duel_forward.5} parent=0 // pred_fallthru
    _
  // Predicated region
  $region10: #{dqn_conv_duel_forward.5} parent=0 // pred_check
    _
  $region11: #{dqn_conv_duel_forward.5} parent=0 // pred_check_branch
    %13 = sbr.rel (0) target = $region13
  $region12: #{dqn_conv_duel_forward.5} parent=0 // pred_region
    _
  $region13: #{dqn_conv_duel_forward.5} parent=0 // pred_fallthru
    _
  %v15 = vld [vmem:[%s0] sm:$0xff]
  %v16 = vld [vmem:[%s0 + $0x8] sm:$0xff]
  %v17 = vld [vmem:[%s0 + $0x10] sm:$0xff]
  %v18 = vld [vmem:[%s0 + $0x18] sm:$0xff]
  %v19 = vld [vmem:[%s0 + $0x20] sm:$0xff]
  %v20 = vld [vmem:[%s0 + $0x28] sm:$0xff]
  %v21 = vld [vmem:[%s0 + $0x30] sm:$0xff]
  %v22 = vld [vmem:[%s0 + $0x38] sm:$0xff]
  %v23 = vld [vmem:[%s0 + $0x40] sm:$0xff]
  %v24 = vld [vmem:[%s0 + $0x48] sm:$0xff]
  %v25 = vld [vmem:[%s0 + $0x50] sm:$0xff]
  %v26 = vld [vmem:[%s0 + $0x58] sm:$0xff]
  %v27 = vld [vmem:[%s0 + $0x60] sm:$0xff]
  %v28 = vld [vmem:[%s0 + $0x68] sm:$0xff]
  %v29 = vld [vmem:[%s0 + $0x70] sm:$0xff]
  %v30 = vld [vmem:[%s0 + $0x78] sm:$0xff]
  %v31 = vld [vmem:[%s1] sm:$0xf]
  %v32 = vld [vmem:[%s1 + $0x4] sm:$0xf]
  %v33 = vld [vmem:[%s1 + $0x8] sm:$0xf]
  %v34 = vld [vmem:[%s1 + $0xc] sm:$0xf]
  %v35 = vld [vmem:[%s1 + $0x10] sm:$0xf]
  %v36 = vld [vmem:[%s1 + $0x14] sm:$0xf]
  %v37 = vld [vmem:[%s1 + $0x18] sm:$0xf]
  %v38 = vld [vmem:[%s1 + $0x1c] sm:$0xf]
  %v39 = vld [vmem:[%s1 + $0x20] sm:$0xf]
  %v40 = vld [vmem:[%s1 + $0x24] sm:$0xf]
  %v41 = vld [vmem:[%s1 + $0x28] sm:$0xf]
  %v42 = vld [vmem:[%s1 + $0x2c] sm:$0xf]
  %v43 = vld [vmem:[%s1 + $0x30] sm:$0xf]
  %v44 = vld [vmem:[%s1 + $0x34] sm:$0xf]
  %v45 = vld [vmem:[%s1 + $0x38] sm:$0xf]
  %v46 = vld [vmem:[%s1 + $0x3c] sm:$0xf]
  %v47 = vld [vmem:[%s1 + $0x40] sm:$0xf]
  %v48 = vld [vmem:[%s1 + $0x44] sm:$0xf]
  %v49 = vld [vmem:[%s1 + $0x48] sm:$0xf]
  %v50 = vld [vmem:[%s1 + $0x4c] sm:$0xf]
  %v51 = vld [vmem:[%s1 + $0x50] sm:$0xf]
  %v52 = vld [vmem:[%s1 + $0x54] sm:$0xf]
  %v53 = vld [vmem:[%s1 + $0x58] sm:$0xf]
  %v54 = vld [vmem:[%s1 + $0x5c] sm:$0xf]
  %v55 = vld [vmem:[%s1 + $0x60] sm:$0xf]
  %v56 = vld [vmem:[%s1 + $0x64] sm:$0xf]
  %v57 = vld [vmem:[%s1 + $0x68] sm:$0xf]
  %v58 = vld [vmem:[%s1 + $0x6c] sm:$0xf]
  %v59 = vld [vmem:[%s1 + $0x70] sm:$0xf]
  %v60 = vld [vmem:[%s1 + $0x74] sm:$0xf]
  %v61 = vld [vmem:[%s1 + $0x78] sm:$0xf]
  %v62 = vld [vmem:[%s1 + $0x7c] sm:$0xf]
  %v63 = vld [vmem:[%s2] sm:$0x1]
  %v65 = vlaneseq
  %v66 = vshrl.u32 %v65, 7
  %v67 = vsub.s32 0, %v66
  %v68 = vrot.slane %v63, %v67
  %v86 = vunpack.c.l.b16 %v15
  %v87 = vunpack.c.h.b16 %v15
  %v88 = vunpack.c.l.b16 %v16
  %v89 = vunpack.c.h.b16 %v16
  %v90 = vunpack.c.l.b16 %v17
  %v91 = vunpack.c.h.b16 %v17
  %v92 = vunpack.c.l.b16 %v18
  %v93 = vunpack.c.h.b16 %v18
  %v94 = vunpack.c.l.b16 %v19
  %v95 = vunpack.c.h.b16 %v19
  %v96 = vunpack.c.l.b16 %v20
  %v97 = vunpack.c.h.b16 %v20
  %v98 = vunpack.c.l.b16 %v21
  %v99 = vunpack.c.h.b16 %v21
  %v100 = vunpack.c.l.b16 %v22
  %v101 = vunpack.c.h.b16 %v22
  %v102 = vunpack.c.l.b16 %v23
  %v103 = vunpack.c.h.b16 %v23
  %v104 = vunpack.c.l.b16 %v24
  %v105 = vunpack.c.h.b16 %v24
  %v106 = vunpack.c.l.b16 %v25
  %v107 = vunpack.c.h.b16 %v25
  %v108 = vunpack.c.l.b16 %v26
  %v109 = vunpack.c.h.b16 %v26
  %v110 = vunpack.c.l.b16 %v27
  %v111 = vunpack.c.h.b16 %v27
  %v112 = vunpack.c.l.b16 %v28
  %v113 = vunpack.c.h.b16 %v28
  %v114 = vunpack.c.l.b16 %v29
  %v115 = vunpack.c.h.b16 %v29
  %v116 = vunpack.c.l.b16 %v30
  %v117 = vunpack.c.h.b16 %v30
  %v118 = vpack.c.b16 %v88, %v86
  %v119 = vpack.c.b16 %v89, %v87
  %v120 = vpack.c.b16 %v92, %v90
  %v121 = vpack.c.b16 %v93, %v91
  %v122 = vpack.c.b16 %v96, %v94
  %v123 = vpack.c.b16 %v97, %v95
  %v124 = vpack.c.b16 %v100, %v98
  %v125 = vpack.c.b16 %v101, %v99
  %v126 = vpack.c.b16 %v104, %v102
  %v127 = vpack.c.b16 %v105, %v103
  %v128 = vpack.c.b16 %v108, %v106
  %v129 = vpack.c.b16 %v109, %v107
  %v130 = vpack.c.b16 %v112, %v110
  %v131 = vpack.c.b16 %v113, %v111
  %v132 = vpack.c.b16 %v116, %v114
  %v133 = vpack.c.b16 %v117, %v115
  %v182 = vunpack.c.l.b16 %v31
  %v183 = vunpack.c.l.b16 %v32
  %v184 = vunpack.c.l.b16 %v33
  %v185 = vunpack.c.l.b16 %v34
  %v186 = vunpack.c.l.b16 %v35
  %v187 = vunpack.c.l.b16 %v36
  %v188 = vunpack.c.l.b16 %v37
  %v189 = vunpack.c.l.b16 %v38
  %v190 = vunpack.c.l.b16 %v39
  %v191 = vunpack.c.l.b16 %v40
  %v192 = vunpack.c.l.b16 %v41
  %v193 = vunpack.c.l.b16 %v42
  %v194 = vunpack.c.l.b16 %v43
  %v195 = vunpack.c.l.b16 %v44
  %v196 = vunpack.c.l.b16 %v45
  %v197 = vunpack.c.l.b16 %v46
  %v198 = vunpack.c.l.b16 %v47
  %v199 = vunpack.c.l.b16 %v48
  %v200 = vunpack.c.l.b16 %v49
  %v201 = vunpack.c.l.b16 %v50
  %v202 = vunpack.c.l.b16 %v51
  %v203 = vunpack.c.l.b16 %v52
  %v204 = vunpack.c.l.b16 %v53
  %v205 = vunpack.c.l.b16 %v54
  %v206 = vunpack.c.l.b16 %v55
  %v207 = vunpack.c.l.b16 %v56
  %v208 = vunpack.c.l.b16 %v57
  %v209 = vunpack.c.l.b16 %v58
  %v210 = vunpack.c.l.b16 %v59
  %v211 = vunpack.c.l.b16 %v60
  %v212 = vunpack.c.l.b16 %v61
  %v213 = vunpack.c.l.b16 %v62
  %v214 = vpack.c.b16 %v183, %v182
  %v215 = vpack.c.b16 %v185, %v184
  %v216 = vpack.c.b16 %v187, %v186
  %v217 = vpack.c.b16 %v189, %v188
  %v218 = vpack.c.b16 %v191, %v190
  %v219 = vpack.c.b16 %v193, %v192
  %v220 = vpack.c.b16 %v195, %v194
  %v221 = vpack.c.b16 %v197, %v196
  %v222 = vpack.c.b16 %v199, %v198
  %v223 = vpack.c.b16 %v201, %v200
  %v224 = vpack.c.b16 %v203, %v202
  %v225 = vpack.c.b16 %v205, %v204
  %v226 = vpack.c.b16 %v207, %v206
  %v227 = vpack.c.b16 %v209, %v208
  %v228 = vpack.c.b16 %v211, %v210
  %v229 = vpack.c.b16 %v213, %v212
  %246 = vmatprep.subr.bf16.mxu0 0
  %247 = vmatpush1.bf16.msra.mxu0 %v214
  %248 = vmatprep.subr.bf16.mxu0 0
  %249 = vmatpush1.bf16.msra.mxu0 %v215
  %250 = vmatprep.subr.bf16.mxu0 0
  %251 = vmatpush1.bf16.msra.mxu0 %v216
  %252 = vmatprep.subr.bf16.mxu0 0
  %253 = vmatpush1.bf16.msra.mxu0 %v217
  %254 = vmatprep.subr.bf16.mxu0 0
  %255 = vmatpush1.bf16.msra.mxu0 %v218
  %256 = vmatprep.subr.bf16.mxu0 0
  %257 = vmatpush1.bf16.msra.mxu0 %v219
  %258 = vmatprep.subr.bf16.mxu0 0
  %259 = vmatpush1.bf16.msra.mxu0 %v220
  %260 = vmatprep.subr.bf16.mxu0 0
  %261 = vmatpush1.bf16.msra.mxu0 %v221
  %262 = vmatprep.subr.bf16.mxu0 0
  %263 = vmatpush1.bf16.msra.mxu0 %v222
  %264 = vmatprep.subr.bf16.mxu0 0
  %265 = vmatpush1.bf16.msra.mxu0 %v223
  %266 = vmatprep.subr.bf16.mxu0 0
  %267 = vmatpush1.bf16.msra.mxu0 %v224
  %268 = vmatprep.subr.bf16.mxu0 0
  %269 = vmatpush1.bf16.msra.mxu0 %v225
  %270 = vmatprep.subr.bf16.mxu0 0
  %271 = vmatpush1.bf16.msra.mxu0 %v226
  %272 = vmatprep.subr.bf16.mxu0 0
  %273 = vmatpush1.bf16.msra.mxu0 %v227
  %274 = vmatprep.subr.bf16.mxu0 0
  %275 = vmatpush1.bf16.msra.mxu0 %v228
  %276 = vmatprep.subr.bf16.mxu0 0
  %277 = vmatpush1.bf16.msra.mxu0 %v229
  %278 = vmatprep.mubr.bf16.mxu0 %v119
  %279 = vmatmul.mubr.bf16.gmra.mrb[0].mxu0 %v118
  %v280 = vpop.f32.mrb[0].mxu0
  %v281 = vadd.f32 %v68, %v280
  %v282 = vpop.f32.mrb[0].mxu0
  %v283 = vpop.f32.mrb[0].mxu0
  %v284 = vadd.f32 %v68, %v283
  %v285 = vpop.f32.mrb[0].mxu0
  %286 = vmatprep.mubr.bf16.mxu0 %v121
  %287 = vmatmul.mubr.bf16.gmra.mrb[0].mxu0 %v120
  %v288 = vpop.f32.mrb[0].mxu0
  %v289 = vadd.f32 %v68, %v288
  %v290 = vpop.f32.mrb[0].mxu0
  %v291 = vpop.f32.mrb[0].mxu0
  %v292 = vadd.f32 %v68, %v291
  %v293 = vpop.f32.mrb[0].mxu0
  %294 = vmatprep.mubr.bf16.mxu0 %v123
  %295 = vmatmul.mubr.bf16.gmra.mrb[0].mxu0 %v122
  %v296 = vpop.f32.mrb[0].mxu0
  %v297 = vadd.f32 %v68, %v296
  %v298 = vpop.f32.mrb[0].mxu0
  %v299 = vpop.f32.mrb[0].mxu0
  %v300 = vadd.f32 %v68, %v299
  %v301 = vpop.f32.mrb[0].mxu0
  %302 = vmatprep.mubr.bf16.mxu0 %v125
  %303 = vmatmul.mubr.bf16.gmra.mrb[0].mxu0 %v124
  %v304 = vpop.f32.mrb[0].mxu0
  %v305 = vadd.f32 %v68, %v304
  %v306 = vpop.f32.mrb[0].mxu0
  %v307 = vpop.f32.mrb[0].mxu0
  %v308 = vadd.f32 %v68, %v307
  %v309 = vpop.f32.mrb[0].mxu0
  %310 = vmatprep.mubr.bf16.mxu0 %v127
  %311 = vmatmul.mubr.bf16.gmra.mrb[0].mxu0 %v126
  %v312 = vpop.f32.mrb[0].mxu0
  %v313 = vadd.f32 %v68, %v312
  %v314 = vpop.f32.mrb[0].mxu0
  %v315 = vpop.f32.mrb[0].mxu0
  %v316 = vadd.f32 %v68, %v315
  %v317 = vpop.f32.mrb[0].mxu0
  %318 = vmatprep.mubr.bf16.mxu0 %v129
  %319 = vmatmul.mubr.bf16.gmra.mrb[0].mxu0 %v128
  %v320 = vpop.f32.mrb[0].mxu0
  %v321 = vadd.f32 %v68, %v320
  %v322 = vpop.f32.mrb[0].mxu0
  %v323 = vpop.f32.mrb[0].mxu0
  %v324 = vadd.f32 %v68, %v323
  %v325 = vpop.f32.mrb[0].mxu0
  %326 = vmatprep.mubr.bf16.mxu0 %v131
  %327 = vmatmul.mubr.bf16.gmra.mrb[0].mxu0 %v130
  %v328 = vpop.f32.mrb[0].mxu0
  %v329 = vadd.f32 %v68, %v328
  %v330 = vpop.f32.mrb[0].mxu0
  %v331 = vpop.f32.mrb[0].mxu0
  %v332 = vadd.f32 %v68, %v331
  %v333 = vpop.f32.mrb[0].mxu0
  %334 = vmatprep.mubr.bf16.mxu0 %v133
  %335 = vmatmul.mubr.bf16.gmra.mrb[0].mxu0 %v132
  %v336 = vpop.f32.mrb[0].mxu0
  %v337 = vadd.f32 %v68, %v336
  %v338 = vpop.f32.mrb[0].mxu0
  %v339 = vpop.f32.mrb[0].mxu0
  %v340 = vadd.f32 %v68, %v339
  %v341 = vpop.f32.mrb[0].mxu0
  %342 = vdwg.mxu0
  %v343 = vmax.f32 %v281, 0.0
  %v344 = vmax.f32 %v284, 0.0
  %v345 = vmax.f32 %v289, 0.0
  %v346 = vmax.f32 %v292, 0.0
  %v347 = vmax.f32 %v297, 0.0
  %v348 = vmax.f32 %v300, 0.0
  %v349 = vmax.f32 %v305, 0.0
  %v350 = vmax.f32 %v308, 0.0
  %v351 = vmax.f32 %v313, 0.0
  %v352 = vmax.f32 %v316, 0.0
  %v353 = vmax.f32 %v321, 0.0
  %v354 = vmax.f32 %v324, 0.0
  %v355 = vmax.f32 %v329, 0.0
  %v356 = vmax.f32 %v332, 0.0
  %v357 = vmax.f32 %v337, 0.0
  %v358 = vmax.f32 %v340, 0.0
  %v359 = vpack.c.bf16 %v344, %v343
  %v360 = vpack.c.bf16 %v346, %v345
  %v361 = vpack.c.bf16 %v348, %v347
  %v362 = vpack.c.bf16 %v350, %v349
  %v363 = vpack.c.bf16 %v352, %v351
  %v364 = vpack.c.bf16 %v354, %v353
  %v365 = vpack.c.bf16 %v356, %v355
  %v366 = vpack.c.bf16 %v358, %v357
  %v375 = vunpack.c.l.b16 %v359
  %v376 = vunpack.c.h.b16 %v359
  %v377 = vunpack.c.l.b16 %v360
  %v378 = vunpack.c.h.b16 %v360
  %v379 = vunpack.c.l.b16 %v361
  %v380 = vunpack.c.h.b16 %v361
  %v381 = vunpack.c.l.b16 %v362
  %v382 = vunpack.c.h.b16 %v362
  %v383 = vunpack.c.l.b16 %v363
  %v384 = vunpack.c.h.b16 %v363
  %v385 = vunpack.c.l.b16 %v364
  %v386 = vunpack.c.h.b16 %v364
  %v387 = vunpack.c.l.b16 %v365
  %v388 = vunpack.c.h.b16 %v365
  %v389 = vunpack.c.l.b16 %v366
  %v390 = vunpack.c.h.b16 %v366
  %v391 = vpack.c.b16 %v375, %v375
  %v392 = vpack.c.b16 %v376, %v376
  %v393 = vpack.c.b16 %v377, %v377
  %v394 = vpack.c.b16 %v378, %v378
  %v395 = vpack.c.b16 %v379, %v379
  %v396 = vpack.c.b16 %v380, %v380
  %v397 = vpack.c.b16 %v381, %v381
  %v398 = vpack.c.b16 %v382, %v382
  %v399 = vpack.c.b16 %v383, %v383
  %v400 = vpack.c.b16 %v384, %v384
  %v401 = vpack.c.b16 %v385, %v385
  %v402 = vpack.c.b16 %v386, %v386
  %v403 = vpack.c.b16 %v387, %v387
  %v404 = vpack.c.b16 %v388, %v388
  %v405 = vpack.c.b16 %v389, %v389
  %v406 = vpack.c.b16 %v390, %v390
  %vm423 = vcmask 257024
  %424 = vst.msk [vmem:[%s3] sm:$0xf] %vm423, %v391
  %425 = vst.msk [vmem:[%s3 + $0x4] sm:$0xf] %vm423, %v392
  %426 = vst.msk [vmem:[%s3 + $0x8] sm:$0xf] %vm423, %v393
  %427 = vst.msk [vmem:[%s3 + $0xc] sm:$0xf] %vm423, %v394
  %428 = vst.msk [vmem:[%s3 + $0x10] sm:$0xf] %vm423, %v395
  %429 = vst.msk [vmem:[%s3 + $0x14] sm:$0xf] %vm423, %v396
  %430 = vst.msk [vmem:[%s3 + $0x18] sm:$0xf] %vm423, %v397
  %431 = vst.msk [vmem:[%s3 + $0x1c] sm:$0xf] %vm423, %v398
  %432 = vst.msk [vmem:[%s3 + $0x20] sm:$0xf] %vm423, %v399
  %433 = vst.msk [vmem:[%s3 + $0x24] sm:$0xf] %vm423, %v400
  %434 = vst.msk [vmem:[%s3 + $0x28] sm:$0xf] %vm423, %v401
  %435 = vst.msk [vmem:[%s3 + $0x2c] sm:$0xf] %vm423, %v402
  %436 = vst.msk [vmem:[%s3 + $0x30] sm:$0xf] %vm423, %v403
  %437 = vst.msk [vmem:[%s3 + $0x34] sm:$0xf] %vm423, %v404
  %438 = vst.msk [vmem:[%s3 + $0x38] sm:$0xf] %vm423, %v405
  %439 = vst.msk [vmem:[%s3 + $0x3c] sm:$0xf] %vm423, %v406
  // Predicated region
  $region14: #{dqn_conv_duel_forward.5} parent=0 // pred_check
    _
  $region15: #{dqn_conv_duel_forward.5} parent=0 // pred_check_branch
    %441 = sbr.rel (0) target = $region17
  $region16: #{dqn_conv_duel_forward.5} parent=0 // pred_region
    _
  $region17: #{dqn_conv_duel_forward.5} parent=0 // pred_fallthru
    _
  // Predicated region
  $region18: #{dqn_conv_duel_forward.5} parent=0 // pred_check
    _
  $region19: #{dqn_conv_duel_forward.5} parent=0 // pred_check_branch
    %443 = sbr.rel (0) target = $region21
  $region20: #{dqn_conv_duel_forward.5} parent=0 // pred_region
    _
  $region21: #{dqn_conv_duel_forward.5} parent=0 // pred_fallthru
    _

// kernel: dqn_conv_duel_forward.6
$region0: #{dqn_conv_duel_forward.6}
  #allocation0 [shape = 'u32[]', space=smem, size = 0x4, offset = 0x4, fixed_abs, tag = 'smem constant byte address 0x4 - core index']
  #allocation1 [shape = 'u32[144,128]{1,0:T(1,128)}', space=vmem, size = 0x12000, scoped, tag = 'internal scratch']
  %s0 = inlined_call_operand.vmem [shape: bf16[18,512], index: 0, kind: input, shape index: {}]
  %s1 = inlined_call_operand.vmem [shape: bf16[512,64], index: 1, kind: input, shape index: {}]
  %s2 = inlined_call_operand.vmem [shape: f32[1,64], index: 2, kind: input, shape index: {}]
  %s3 = inlined_call_operand.vmem [shape: bf16[18,64], index: 3, kind: output, shape index: {}]
  %s4 = sld [smem:[#allocation0]]
  $region22: #{dqn_conv_duel_forward.6} parent=0
    _
  %s6 = ssub.s32 1, %s4
  %s7 = scalar_select 0, %s6, %s4
  // Predicated region
  $region2: #{dqn_conv_duel_forward.6} parent=0 // pred_check
    _
  $region3: #{dqn_conv_duel_forward.6} parent=0 // pred_check_branch
    %9 = sbr.rel (0) target = $region5
  $region4: #{dqn_conv_duel_forward.6} parent=0 // pred_region
    _
  $region5: #{dqn_conv_duel_forward.6} parent=0 // pred_fallthru
    _
  // Predicated region
  $region6: #{dqn_conv_duel_forward.6} parent=0 // pred_check
    _
  $region7: #{dqn_conv_duel_forward.6} parent=0 // pred_check_branch
    %11 = sbr.rel (0) target = $region9
  $region8: #{dqn_conv_duel_forward.6} parent=0 // pred_region
    _
  $region9: #{dqn_conv_duel_forward.6} parent=0 // pred_fallthru
    _
  // Predicated region
  $region10: #{dqn_conv_duel_forward.6} parent=0 // pred_check
    _
  $region11: #{dqn_conv_duel_forward.6} parent=0 // pred_check_branch
    %13 = sbr.rel (0) target = $region13
  $region12: #{dqn_conv_duel_forward.6} parent=0 // pred_region
    _
  $region13: #{dqn_conv_duel_forward.6} parent=0 // pred_fallthru
    _
  %v15 = vld [vmem:[%s0] sm:$0xff]
  %v16 = vld [vmem:[%s0 + $0x8] sm:$0xff]
  %v17 = vld [vmem:[%s0 + $0x10] sm:$0xff]
  %v18 = vld [vmem:[%s0 + $0x18] sm:$0xff]
  %v19 = vld [vmem:[%s0 + $0x20] sm:$0x11]
  %v20 = vld [vmem:[%s0 + $0x28] sm:$0x11]
  %v21 = vld [vmem:[%s1] sm:$0xf]
  %v22 = vld [vmem:[%s1 + $0x4] sm:$0xf]
  %v23 = vld [vmem:[%s1 + $0x8] sm:$0xf]
  %v24 = vld [vmem:[%s1 + $0xc] sm:$0xf]
  %v25 = vld [vmem:[%s1 + $0x10] sm:$0xf]
  %v26 = vld [vmem:[%s1 + $0x14] sm:$0xf]
  %v27 = vld [vmem:[%s1 + $0x18] sm:$0xf]
  %v28 = vld [vmem:[%s1 + $0x1c] sm:$0xf]
  %v29 = vld [vmem:[%s1 + $0x20] sm:$0xf]
  %v30 = vld [vmem:[%s1 + $0x24] sm:$0xf]
  %v31 = vld [vmem:[%s1 + $0x28] sm:$0xf]
  %v32 = vld [vmem:[%s1 + $0x2c] sm:$0xf]
  %v33 = vld [vmem:[%s1 + $0x30] sm:$0xf]
  %v34 = vld [vmem:[%s1 + $0x34] sm:$0xf]
  %v35 = vld [vmem:[%s1 + $0x38] sm:$0xf]
  %v36 = vld [vmem:[%s1 + $0x3c] sm:$0xf]
  %v37 = vld [vmem:[%s1 + $0x40] sm:$0xf]
  %v38 = vld [vmem:[%s1 + $0x44] sm:$0xf]
  %v39 = vld [vmem:[%s1 + $0x48] sm:$0xf]
  %v40 = vld [vmem:[%s1 + $0x4c] sm:$0xf]
  %v41 = vld [vmem:[%s1 + $0x50] sm:$0xf]
  %v42 = vld [vmem:[%s1 + $0x54] sm:$0xf]
  %v43 = vld [vmem:[%s1 + $0x58] sm:$0xf]
  %v44 = vld [vmem:[%s1 + $0x5c] sm:$0xf]
  %v45 = vld [vmem:[%s1 + $0x60] sm:$0xf]
  %v46 = vld [vmem:[%s1 + $0x64] sm:$0xf]
  %v47 = vld [vmem:[%s1 + $0x68] sm:$0xf]
  %v48 = vld [vmem:[%s1 + $0x6c] sm:$0xf]
  %v49 = vld [vmem:[%s1 + $0x70] sm:$0xf]
  %v50 = vld [vmem:[%s1 + $0x74] sm:$0xf]
  %v51 = vld [vmem:[%s1 + $0x78] sm:$0xf]
  %v52 = vld [vmem:[%s1 + $0x7c] sm:$0xf]
  %v53 = vld [vmem:[%s1 + $0x80] sm:$0xf]
  %v54 = vld [vmem:[%s1 + $0x84] sm:$0xf]
  %v55 = vld [vmem:[%s1 + $0x88] sm:$0xf]
  %v56 = vld [vmem:[%s1 + $0x8c] sm:$0xf]
  %v57 = vld [vmem:[%s1 + $0x90] sm:$0xf]
  %v58 = vld [vmem:[%s1 + $0x94] sm:$0xf]
  %v59 = vld [vmem:[%s1 + $0x98] sm:$0xf]
  %v60 = vld [vmem:[%s1 + $0x9c] sm:$0xf]
  %v61 = vld [vmem:[%s1 + $0xa0] sm:$0xf]
  %v62 = vld [vmem:[%s1 + $0xa4] sm:$0xf]
  %v63 = vld [vmem:[%s1 + $0xa8] sm:$0xf]
  %v64 = vld [vmem:[%s1 + $0xac] sm:$0xf]
  %v65 = vld [vmem:[%s1 + $0xb0] sm:$0xf]
  %v66 = vld [vmem:[%s1 + $0xb4] sm:$0xf]
  %v67 = vld [vmem:[%s1 + $0xb8] sm:$0xf]
  %v68 = vld [vmem:[%s1 + $0xbc] sm:$0xf]
  %v69 = vld [vmem:[%s1 + $0xc0] sm:$0xf]
  %v70 = vld [vmem:[%s1 + $0xc4] sm:$0xf]
  %v71 = vld [vmem:[%s1 + $0xc8] sm:$0xf]
  %v72 = vld [vmem:[%s1 + $0xcc] sm:$0xf]
  %v73 = vld [vmem:[%s1 + $0xd0] sm:$0xf]
  %v74 = vld [vmem:[%s1 + $0xd4] sm:$0xf]
  %v75 = vld [vmem:[%s1 + $0xd8] sm:$0xf]
  %v76 = vld [vmem:[%s1 + $0xdc] sm:$0xf]
  %v77 = vld [vmem:[%s1 + $0xe0] sm:$0xf]
  %v78 = vld [vmem:[%s1 + $0xe4] sm:$0xf]
  %v79 = vld [vmem:[%s1 + $0xe8] sm:$0xf]
  %v80 = vld [vmem:[%s1 + $0xec] sm:$0xf]
  %v81 = vld [vmem:[%s1 + $0xf0] sm:$0xf]
  %v82 = vld [vmem:[%s1 + $0xf4] sm:$0xf]
  %v83 = vld [vmem:[%s1 + $0xf8] sm:$0xf]
  %v84 = vld [vmem:[%s1 + $0xfc] sm:$0xf]
  %v85 = vld [vmem:[%s2] sm:$0x1]
  %v87 = vlaneseq
  %v88 = vshrl.u32 %v87, 7
  %v89 = vsub.s32 0, %v88
  %v90 = vrot.slane %v85, %v89
  %v98 = vunpack.c.l.b16 %v15
  %v99 = vunpack.c.h.b16 %v15
  %v100 = vunpack.c.l.b16 %v16
  %v101 = vunpack.c.h.b16 %v16
  %v102 = vunpack.c.l.b16 %v17
  %v103 = vunpack.c.h.b16 %v17
  %v104 = vunpack.c.l.b16 %v18
  %v105 = vunpack.c.h.b16 %v18
  %v106 = vunpack.c.l.b16 %v19
  %v107 = vunpack.c.h.b16 %v19
  %v108 = vunpack.c.l.b16 %v20
  %v109 = vunpack.c.h.b16 %v20
  %v110 = vpack.c.b16 %v102, %v98
  %v111 = vpack.c.b16 %v103, %v99
  %v112 = vpack.c.b16 %v104, %v100
  %v113 = vpack.c.b16 %v105, %v101
  %v114 = vpack.c.b16 %v106, %v106
  %v115 = vpack.c.b16 %v107, %v107
  %v116 = vpack.c.b16 %v108, %v108
  %v117 = vpack.c.b16 %v109, %v109
  %v190 = vunpack.c.l.b16 %v21
  %v191 = vunpack.c.l.b16 %v22
  %v192 = vunpack.c.l.b16 %v23
  %v193 = vunpack.c.l.b16 %v24
  %v194 = vunpack.c.l.b16 %v25
  %v195 = vunpack.c.l.b16 %v26
  %v196 = vunpack.c.l.b16 %v27
  %v197 = vunpack.c.l.b16 %v28
  %v198 = vunpack.c.l.b16 %v29
  %v199 = vunpack.c.l.b16 %v30
  %v200 = vunpack.c.l.b16 %v31
  %v201 = vunpack.c.l.b16 %v32
  %v202 = vunpack.c.l.b16 %v33
  %v203 = vunpack.c.l.b16 %v34
  %v204 = vunpack.c.l.b16 %v35
  %v205 = vunpack.c.l.b16 %v36
  %v206 = vunpack.c.l.b16 %v37
  %v207 = vunpack.c.l.b16 %v38
  %v208 = vunpack.c.l.b16 %v39
  %v209 = vunpack.c.l.b16 %v40
  %v210 = vunpack.c.l.b16 %v41
  %v211 = vunpack.c.l.b16 %v42
  %v212 = vunpack.c.l.b16 %v43
  %v213 = vunpack.c.l.b16 %v44
  %v214 = vunpack.c.l.b16 %v45
  %v215 = vunpack.c.l.b16 %v46
  %v216 = vunpack.c.l.b16 %v47
  %v217 = vunpack.c.l.b16 %v48
  %v218 = vunpack.c.l.b16 %v49
  %v219 = vunpack.c.l.b16 %v50
  %v220 = vunpack.c.l.b16 %v51
  %v221 = vunpack.c.l.b16 %v52
  %v222 = vunpack.c.l.b16 %v53
  %v223 = vunpack.c.l.b16 %v54
  %v224 = vunpack.c.l.b16 %v55
  %v225 = vunpack.c.l.b16 %v56
  %v226 = vunpack.c.l.b16 %v57
  %v227 = vunpack.c.l.b16 %v58
  %v228 = vunpack.c.l.b16 %v59
  %v229 = vunpack.c.l.b16 %v60
  %v230 = vunpack.c.l.b16 %v61
  %v231 = vunpack.c.l.b16 %v62
  %v232 = vunpack.c.l.b16 %v63
  %v233 = vunpack.c.l.b16 %v64
  %v234 = vunpack.c.l.b16 %v65
  %v235 = vunpack.c.l.b16 %v66
  %v236 = vunpack.c.l.b16 %v67
  %v237 = vunpack.c.l.b16 %v68
  %v238 = vunpack.c.l.b16 %v69
  %v239 = vunpack.c.l.b16 %v70
  %v240 = vunpack.c.l.b16 %v71
  %v241 = vunpack.c.l.b16 %v72
  %v242 = vunpack.c.l.b16 %v73
  %v243 = vunpack.c.l.b16 %v74
  %v244 = vunpack.c.l.b16 %v75
  %v245 = vunpack.c.l.b16 %v76
  %v246 = vunpack.c.l.b16 %v77
  %v247 = vunpack.c.l.b16 %v78
  %v248 = vunpack.c.l.b16 %v79
  %v249 = vunpack.c.l.b16 %v80
  %v250 = vunpack.c.l.b16 %v81
  %v251 = vunpack.c.l.b16 %v82
  %v252 = vunpack.c.l.b16 %v83
  %v253 = vunpack.c.l.b16 %v84
  %v254 = vpack.c.b16 %v191, %v190
  %v255 = vpack.c.b16 %v193, %v192
  %v256 = vpack.c.b16 %v195, %v194
  %v257 = vpack.c.b16 %v197, %v196
  %v258 = vpack.c.b16 %v199, %v198
  %v259 = vpack.c.b16 %v201, %v200
  %v260 = vpack.c.b16 %v203, %v202
  %v261 = vpack.c.b16 %v205, %v204
  %v262 = vpack.c.b16 %v207, %v206
  %v263 = vpack.c.b16 %v209, %v208
  %v264 = vpack.c.b16 %v211, %v210
  %v265 = vpack.c.b16 %v213, %v212
  %v266 = vpack.c.b16 %v215, %v214
  %v267 = vpack.c.b16 %v217, %v216
  %v268 = vpack.c.b16 %v219, %v218
  %v269 = vpack.c.b16 %v221, %v220
  %v270 = vpack.c.b16 %v223, %v222
  %v271 = vpack.c.b16 %v225, %v224
  %v272 = vpack.c.b16 %v227, %v226
  %v273 = vpack.c.b16 %v229, %v228
  %v274 = vpack.c.b16 %v231, %v230
  %v275 = vpack.c.b16 %v233, %v232
  %v276 = vpack.c.b16 %v235, %v234
  %v277 = vpack.c.b16 %v237, %v236
  %v278 = vpack.c.b16 %v239, %v238
  %v279 = vpack.c.b16 %v241, %v240
  %v280 = vpack.c.b16 %v243, %v242
  %v281 = vpack.c.b16 %v245, %v244
  %v282 = vpack.c.b16 %v247, %v246
  %v283 = vpack.c.b16 %v249, %v248
  %v284 = vpack.c.b16 %v251, %v250
  %v285 = vpack.c.b16 %v253, %v252
  %318 = vmatprep.subr.bf16.mxu0 0
  %319 = vmatpush1.bf16.msra.mxu0 %v254
  %320 = vmatprep.subr.bf16.mxu0 0
  %321 = vmatpush1.bf16.msra.mxu0 %v255
  %322 = vmatprep.subr.bf16.mxu0 0
  %323 = vmatpush1.bf16.msra.mxu0 %v256
  %324 = vmatprep.subr.bf16.mxu0 0
  %325 = vmatpush1.bf16.msra.mxu0 %v257
  %326 = vmatprep.subr.bf16.mxu0 0
  %327 = vmatpush1.bf16.msra.mxu0 %v258
  %328 = vmatprep.subr.bf16.mxu0 0
  %329 = vmatpush1.bf16.msra.mxu0 %v259
  %330 = vmatprep.subr.bf16.mxu0 0
  %331 = vmatpush1.bf16.msra.mxu0 %v260
  %332 = vmatprep.subr.bf16.mxu0 0
  %333 = vmatpush1.bf16.msra.mxu0 %v261
  %334 = vmatprep.subr.bf16.mxu0 0
  %335 = vmatpush1.bf16.msra.mxu0 %v262
  %336 = vmatprep.subr.bf16.mxu0 0
  %337 = vmatpush1.bf16.msra.mxu0 %v263
  %338 = vmatprep.subr.bf16.mxu0 0
  %339 = vmatpush1.bf16.msra.mxu0 %v264
  %340 = vmatprep.subr.bf16.mxu0 0
  %341 = vmatpush1.bf16.msra.mxu0 %v265
  %342 = vmatprep.subr.bf16.mxu0 0
  %343 = vmatpush1.bf16.msra.mxu0 %v266
  %344 = vmatprep.subr.bf16.mxu0 0
  %345 = vmatpush1.bf16.msra.mxu0 %v267
  %346 = vmatprep.subr.bf16.mxu0 0
  %347 = vmatpush1.bf16.msra.mxu0 %v268
  %348 = vmatprep.subr.bf16.mxu0 0
  %349 = vmatpush1.bf16.msra.mxu0 %v269
  %350 = vmatprep.mubr.bf16.mxu0 %v111
  %351 = vmatmul.mubr.bf16.gmra.mrb[0].mxu0 %v110
  %v352 = vpop.f32.mrb[0].mxu0
  %v353 = vadd.f32 %v90, %v352
  %v354 = vpop.f32.mrb[0].mxu0
  %v355 = vpop.f32.mrb[0].mxu0
  %v356 = vadd.f32 %v90, %v355
  %v357 = vpop.f32.mrb[0].mxu0
  %358 = vmatprep.mubr.bf16.mxu0 %v115
  %359 = vmatmul.mubr.bf16.gmra.mrb[0].mxu0 %v114
  %v360 = vpop.f32.mrb[0].mxu0
  %v361 = vadd.f32 %v90, %v360
  %v362 = vpop.f32.mrb[0].mxu0
  %v363 = vpop.f32.mrb[0].mxu0
  %v364 = vpop.f32.mrb[0].mxu0
  %365 = vdwg.mxu0
  %366 = vmatprep.subr.bf16.mxu0 0
  %367 = vmatpush1.bf16.msra.mxu0 %v270
  %368 = vmatprep.subr.bf16.mxu0 0
  %369 = vmatpush1.bf16.msra.mxu0 %v271
  %370 = vmatprep.subr.bf16.mxu0 0
  %371 = vmatpush1.bf16.msra.mxu0 %v272
  %372 = vmatprep.subr.bf16.mxu0 0
  %373 = vmatpush1.bf16.msra.mxu0 %v273
  %374 = vmatprep.subr.bf16.mxu0 0
  %375 = vmatpush1.bf16.msra.mxu0 %v274
  %376 = vmatprep.subr.bf16.mxu0 0
  %377 = vmatpush1.bf16.msra.mxu0 %v275
  %378 = vmatprep.subr.bf16.mxu0 0
  %379 = vmatpush1.bf16.msra.mxu0 %v276
  %380 = vmatprep.subr.bf16.mxu0 0
  %381 = vmatpush1.bf16.msra.mxu0 %v277
  %382 = vmatprep.subr.bf16.mxu0 0
  %383 = vmatpush1.bf16.msra.mxu0 %v278
  %384 = vmatprep.subr.bf16.mxu0 0
  %385 = vmatpush1.bf16.msra.mxu0 %v279
  %386 = vmatprep.subr.bf16.mxu0 0
  %387 = vmatpush1.bf16.msra.mxu0 %v280
  %388 = vmatprep.subr.bf16.mxu0 0
  %389 = vmatpush1.bf16.msra.mxu0 %v281
  %390 = vmatprep.subr.bf16.mxu0 0
  %391 = vmatpush1.bf16.msra.mxu0 %v282
  %392 = vmatprep.subr.bf16.mxu0 0
  %393 = vmatpush1.bf16.msra.mxu0 %v283
  %394 = vmatprep.subr.bf16.mxu0 0
  %395 = vmatpush1.bf16.msra.mxu0 %v284
  %396 = vmatprep.subr.bf16.mxu0 0
  %397 = vmatpush1.bf16.msra.mxu0 %v285
  %398 = vmatprep.mubr.bf16.mxu0 %v113
  %399 = vmatmul.mubr.bf16.gmra.mrb[0].mxu0 %v112
  %v400 = vpop.f32.mrb[0].mxu0
  %v401 = vadd.f32 %v353, %v400
  %v402 = vpop.f32.mrb[0].mxu0
  %v403 = vpop.f32.mrb[0].mxu0
  %v404 = vadd.f32 %v356, %v403
  %v405 = vpop.f32.mrb[0].mxu0
  %406 = vmatprep.mubr.bf16.mxu0 %v117
  %407 = vmatmul.mubr.bf16.gmra.mrb[0].mxu0 %v116
  %v408 = vpop.f32.mrb[0].mxu0
  %v409 = vadd.f32 %v361, %v408
  %v410 = vpop.f32.mrb[0].mxu0
  %v411 = vpop.f32.mrb[0].mxu0
  %v412 = vpop.f32.mrb[0].mxu0
  %413 = vdwg.mxu0
  %v414 = vmax.f32 %v401, 0.0
  %v415 = vmax.f32 %v404, 0.0
  %v416 = vmax.f32 %v409, 0.0
  %v417 = vpack.c.bf16 %v415, %v414
  %v418 = vpack.c.bf16 %v416, %v416
  %v421 = vunpack.c.l.b16 %v417
  %v422 = vunpack.c.h.b16 %v417
  %v423 = vunpack.c.l.b16 %v418
  %v424 = vpack.c.b16 %v421, %v421
  %v425 = vpack.c.b16 %v422, %v422
  %v426 = vpack.c.b16 %v423, %v423
  %vm430 = vcmask 519168
  %431 = vst.msk [vmem:[%s3] sm:$0xf] %vm430, %v424
  %432 = vst.msk [vmem:[%s3 + $0x4] sm:$0xf] %vm430, %v425
  %vm433 = vcmask 516096
  %434 = vst.msk [vmem:[%s3 + $0x8] sm:$0x1] %vm433, %v426
  // Predicated region
  $region14: #{dqn_conv_duel_forward.6} parent=0 // pred_check
    _
  $region15: #{dqn_conv_duel_forward.6} parent=0 // pred_check_branch
    %436 = sbr.rel (0) target = $region17
  $region16: #{dqn_conv_duel_forward.6} parent=0 // pred_region
    _
  $region17: #{dqn_conv_duel_forward.6} parent=0 // pred_fallthru
    _
  // Predicated region
  $region18: #{dqn_conv_duel_forward.6} parent=0 // pred_check
    _
  $region19: #{dqn_conv_duel_forward.6} parent=0 // pred_check_branch
    %438 = sbr.rel (0) target = $region21
  $region20: #{dqn_conv_duel_forward.6} parent=0 // pred_region
    _
  $region21: #{dqn_conv_duel_forward.6} parent=0 // pred_fallthru
    _

// kernel: dqn_conv_duel_forward.7
$region0: #{dqn_conv_duel_forward.7}
  #allocation0 [shape = 'u32[]', space=smem, size = 0x4, offset = 0x4, fixed_abs, tag = 'smem constant byte address 0x4 - core index']
  #allocation1 [shape = 'u32[144,128]{1,0:T(1,128)}', space=vmem, size = 0x12000, scoped, tag = 'internal scratch']
  %s0 = inlined_call_operand.vmem [shape: bf16[2,576], index: 0, kind: input, shape index: {}]
  %s1 = inlined_call_operand.vmem [shape: bf16[576,64], index: 1, kind: input, shape index: {}]
  %s2 = inlined_call_operand.vmem [shape: f32[1,64], index: 2, kind: input, shape index: {}]
  %s3 = inlined_call_operand.vmem [shape: bf16[2,64], index: 3, kind: output, shape index: {}]
  %s4 = sld [smem:[#allocation0]]
  $region22: #{dqn_conv_duel_forward.7} parent=0
    _
  %s6 = ssub.s32 1, %s4
  %s7 = scalar_select 0, %s6, %s4
  // Predicated region
  $region2: #{dqn_conv_duel_forward.7} parent=0 // pred_check
    _
  $region3: #{dqn_conv_duel_forward.7} parent=0 // pred_check_branch
    %9 = sbr.rel (0) target = $region5
  $region4: #{dqn_conv_duel_forward.7} parent=0 // pred_region
    _
  $region5: #{dqn_conv_duel_forward.7} parent=0 // pred_fallthru
    _
  // Predicated region
  $region6: #{dqn_conv_duel_forward.7} parent=0 // pred_check
    _
  $region7: #{dqn_conv_duel_forward.7} parent=0 // pred_check_branch
    %11 = sbr.rel (0) target = $region9
  $region8: #{dqn_conv_duel_forward.7} parent=0 // pred_region
    _
  $region9: #{dqn_conv_duel_forward.7} parent=0 // pred_fallthru
    _
  // Predicated region
  $region10: #{dqn_conv_duel_forward.7} parent=0 // pred_check
    _
  $region11: #{dqn_conv_duel_forward.7} parent=0 // pred_check_branch
    %13 = sbr.rel (0) target = $region13
  $region12: #{dqn_conv_duel_forward.7} parent=0 // pred_region
    _
  $region13: #{dqn_conv_duel_forward.7} parent=0 // pred_fallthru
    _
  %v15 = vld [vmem:[%s0] sm:$0x1f]
  %v16 = vld [vmem:[%s1] sm:$0xf]
  %v17 = vld [vmem:[%s1 + $0x4] sm:$0xf]
  %v18 = vld [vmem:[%s1 + $0x8] sm:$0xf]
  %v19 = vld [vmem:[%s1 + $0xc] sm:$0xf]
  %v20 = vld [vmem:[%s1 + $0x10] sm:$0xf]
  %v21 = vld [vmem:[%s1 + $0x14] sm:$0xf]
  %v22 = vld [vmem:[%s1 + $0x18] sm:$0xf]
  %v23 = vld [vmem:[%s1 + $0x1c] sm:$0xf]
  %v24 = vld [vmem:[%s1 + $0x20] sm:$0xf]
  %v25 = vld [vmem:[%s1 + $0x24] sm:$0xf]
  %v26 = vld [vmem:[%s1 + $0x28] sm:$0xf]
  %v27 = vld [vmem:[%s1 + $0x2c] sm:$0xf]
  %v28 = vld [vmem:[%s1 + $0x30] sm:$0xf]
  %v29 = vld [vmem:[%s1 + $0x34] sm:$0xf]
  %v30 = vld [vmem:[%s1 + $0x38] sm:$0xf]
  %v31 = vld [vmem:[%s1 + $0x3c] sm:$0xf]
  %v32 = vld [vmem:[%s1 + $0x40] sm:$0xf]
  %v33 = vld [vmem:[%s1 + $0x44] sm:$0xf]
  %v34 = vld [vmem:[%s1 + $0x48] sm:$0xf]
  %v35 = vld [vmem:[%s1 + $0x4c] sm:$0xf]
  %v36 = vld [vmem:[%s1 + $0x50] sm:$0xf]
  %v37 = vld [vmem:[%s1 + $0x54] sm:$0xf]
  %v38 = vld [vmem:[%s1 + $0x58] sm:$0xf]
  %v39 = vld [vmem:[%s1 + $0x5c] sm:$0xf]
  %v40 = vld [vmem:[%s1 + $0x60] sm:$0xf]
  %v41 = vld [vmem:[%s1 + $0x64] sm:$0xf]
  %v42 = vld [vmem:[%s1 + $0x68] sm:$0xf]
  %v43 = vld [vmem:[%s1 + $0x6c] sm:$0xf]
  %v44 = vld [vmem:[%s1 + $0x70] sm:$0xf]
  %v45 = vld [vmem:[%s1 + $0x74] sm:$0xf]
  %v46 = vld [vmem:[%s1 + $0x78] sm:$0xf]
  %v47 = vld [vmem:[%s1 + $0x7c] sm:$0xf]
  %v48 = vld [vmem:[%s1 + $0x80] sm:$0xf]
  %v49 = vld [vmem:[%s1 + $0x84] sm:$0xf]
  %v50 = vld [vmem:[%s1 + $0x88] sm:$0xf]
  %v51 = vld [vmem:[%s1 + $0x8c] sm:$0xf]
  %v52 = vld [vmem:[%s1 + $0x90] sm:$0xf]
  %v53 = vld [vmem:[%s1 + $0x94] sm:$0xf]
  %v54 = vld [vmem:[%s1 + $0x98] sm:$0xf]
  %v55 = vld [vmem:[%s1 + $0x9c] sm:$0xf]
  %v56 = vld [vmem:[%s1 + $0xa0] sm:$0xf]
  %v57 = vld [vmem:[%s1 + $0xa4] sm:$0xf]
  %v58 = vld [vmem:[%s1 + $0xa8] sm:$0xf]
  %v59 = vld [vmem:[%s1 + $0xac] sm:$0xf]
  %v60 = vld [vmem:[%s1 + $0xb0] sm:$0xf]
  %v61 = vld [vmem:[%s1 + $0xb4] sm:$0xf]
  %v62 = vld [vmem:[%s1 + $0xb8] sm:$0xf]
  %v63 = vld [vmem:[%s1 + $0xbc] sm:$0xf]
  %v64 = vld [vmem:[%s1 + $0xc0] sm:$0xf]
  %v65 = vld [vmem:[%s1 + $0xc4] sm:$0xf]
  %v66 = vld [vmem:[%s1 + $0xc8] sm:$0xf]
  %v67 = vld [vmem:[%s1 + $0xcc] sm:$0xf]
  %v68 = vld [vmem:[%s1 + $0xd0] sm:$0xf]
  %v69 = vld [vmem:[%s1 + $0xd4] sm:$0xf]
  %v70 = vld [vmem:[%s1 + $0xd8] sm:$0xf]
  %v71 = vld [vmem:[%s1 + $0xdc] sm:$0xf]
  %v72 = vld [vmem:[%s1 + $0xe0] sm:$0xf]
  %v73 = vld [vmem:[%s1 + $0xe4] sm:$0xf]
  %v74 = vld [vmem:[%s1 + $0xe8] sm:$0xf]
  %v75 = vld [vmem:[%s1 + $0xec] sm:$0xf]
  %v76 = vld [vmem:[%s1 + $0xf0] sm:$0xf]
  %v77 = vld [vmem:[%s1 + $0xf4] sm:$0xf]
  %v78 = vld [vmem:[%s1 + $0xf8] sm:$0xf]
  %v79 = vld [vmem:[%s1 + $0xfc] sm:$0xf]
  %v80 = vld [vmem:[%s1 + $0x100] sm:$0xf]
  %v81 = vld [vmem:[%s1 + $0x104] sm:$0xf]
  %v82 = vld [vmem:[%s1 + $0x108] sm:$0xf]
  %v83 = vld [vmem:[%s1 + $0x10c] sm:$0xf]
  %v84 = vld [vmem:[%s1 + $0x110] sm:$0xf]
  %v85 = vld [vmem:[%s1 + $0x114] sm:$0xf]
  %v86 = vld [vmem:[%s1 + $0x118] sm:$0xf]
  %v87 = vld [vmem:[%s1 + $0x11c] sm:$0xf]
  %v88 = vld [vmem:[%s2] sm:$0x1]
  %v90 = vlaneseq
  %v91 = vshrl.u32 %v90, 7
  %v92 = vsub.s32 0, %v91
  %v93 = vrot.slane %v88, %v92
  %v96 = vcombine.high %v15, %v15
  %v98 = vunpack.c.l.s4 1966171168
  %v99 = vunpack.c.0.s8 %v98
  %v100 = vlaneseq
  %v101 = vshrl.u32 %v100, 7
  %v102 = vsub.s32 %v99, %v101
  %v103 = vrot.slane %v15, %v102
  %v105 = vunpack.c.l.s4 1966171168
  %v106 = vunpack.c.0.s8 %v105
  %v107 = vlaneseq
  %v108 = vshrl.u32 %v107, 7
  %v109 = vsub.s32 %v106, %v108
  %v110 = vrot.slane %v96, %v109
  %v111 = vcombine.high %v103, %v103
  %v113 = vunpack.c.l.s4 1966171168
  %v114 = vunpack.c.0.s8 %v113
  %v115 = vlaneseq
  %v116 = vshrl.u32 %v115, 7
  %v117 = vsub.s32 %v114, %v116
  %v118 = vrot.slane %v103, %v117
  %v120 = vunpack.c.l.s4 1966171168
  %v121 = vunpack.c.0.s8 %v120
  %v122 = vlaneseq
  %v123 = vshrl.u32 %v122, 7
  %v124 = vsub.s32 %v121, %v123
  %v125 = vrot.slane %v110, %v124
  %v127 = vunpack.c.l.s4 1966171168
  %v128 = vunpack.c.0.s8 %v127
  %v129 = vlaneseq
  %v130 = vshrl.u32 %v129, 7
  %v131 = vsub.s32 %v128, %v130
  %v132 = vrot.slane %v111, %v131
  %v133 = vcombine.high %v118, %v118
  %v134 = vcombine.high %v132, %v132
  %v211 = vunpack.c.l.b16 %v16
  %v212 = vunpack.c.l.b16 %v17
  %v213 = vunpack.c.l.b16 %v18
  %v214 = vunpack.c.l.b16 %v19
  %v215 = vunpack.c.l.b16 %v20
  %v216 = vunpack.c.l.b16 %v21
  %v217 = vunpack.c.l.b16 %v22
  %v218 = vunpack.c.l.b16 %v23
  %v219 = vunpack.c.l.b16 %v24
  %v220 = vunpack.c.l.b16 %v25
  %v221 = vunpack.c.l.b16 %v26
  %v222 = vunpack.c.l.b16 %v27
  %v223 = vunpack.c.l.b16 %v28
  %v224 = vunpack.c.l.b16 %v29
  %v225 = vunpack.c.l.b16 %v30
  %v226 = vunpack.c.l.b16 %v31
  %v227 = vunpack.c.l.b16 %v32
  %v228 = vunpack.c.l.b16 %v33
  %v229 = vunpack.c.l.b16 %v34
  %v230 = vunpack.c.l.b16 %v35
  %v231 = vunpack.c.l.b16 %v36
  %v232 = vunpack.c.l.b16 %v37
  %v233 = vunpack.c.l.b16 %v38
  %v234 = vunpack.c.l.b16 %v39
  %v235 = vunpack.c.l.b16 %v40
  %v236 = vunpack.c.l.b16 %v41
  %v237 = vunpack.c.l.b16 %v42
  %v238 = vunpack.c.l.b16 %v43
  %v239 = vunpack.c.l.b16 %v44
  %v240 = vunpack.c.l.b16 %v45
  %v241 = vunpack.c.l.b16 %v46
  %v242 = vunpack.c.l.b16 %v47
  %v243 = vunpack.c.l.b16 %v48
  %v244 = vunpack.c.l.b16 %v49
  %v245 = vunpack.c.l.b16 %v50
  %v246 = vunpack.c.l.b16 %v51
  %v247 = vunpack.c.l.b16 %v52
  %v248 = vunpack.c.l.b16 %v53
  %v249 = vunpack.c.l.b16 %v54
  %v250 = vunpack.c.l.b16 %v55
  %v251 = vunpack.c.l.b16 %v56
  %v252 = vunpack.c.l.b16 %v57
  %v253 = vunpack.c.l.b16 %v58
  %v254 = vunpack.c.l.b16 %v59
  %v255 = vunpack.c.l.b16 %v60
  %v256 = vunpack.c.l.b16 %v61
  %v257 = vunpack.c.l.b16 %v62
  %v258 = vunpack.c.l.b16 %v63
  %v259 = vunpack.c.l.b16 %v64
  %v260 = vunpack.c.l.b16 %v65
  %v261 = vunpack.c.l.b16 %v66
  %v262 = vunpack.c.l.b16 %v67
  %v263 = vunpack.c.l.b16 %v68
  %v264 = vunpack.c.l.b16 %v69
  %v265 = vunpack.c.l.b16 %v70
  %v266 = vunpack.c.l.b16 %v71
  %v267 = vunpack.c.l.b16 %v72
  %v268 = vunpack.c.l.b16 %v73
  %v269 = vunpack.c.l.b16 %v74
  %v270 = vunpack.c.l.b16 %v75
  %v271 = vunpack.c.l.b16 %v76
  %v272 = vunpack.c.l.b16 %v77
  %v273 = vunpack.c.l.b16 %v78
  %v274 = vunpack.c.l.b16 %v79
  %v275 = vunpack.c.l.b16 %v80
  %v276 = vunpack.c.l.b16 %v81
  %v277 = vunpack.c.l.b16 %v82
  %v278 = vunpack.c.l.b16 %v83
  %v279 = vunpack.c.l.b16 %v84
  %v280 = vunpack.c.l.b16 %v85
  %v281 = vunpack.c.l.b16 %v86
  %v282 = vunpack.c.l.b16 %v87
  %v283 = vpack.c.b16 %v212, %v211
  %v284 = vpack.c.b16 %v214, %v213
  %v285 = vpack.c.b16 %v216, %v215
  %v286 = vpack.c.b16 %v218, %v217
  %v287 = vpack.c.b16 %v220, %v219
  %v288 = vpack.c.b16 %v222, %v221
  %v289 = vpack.c.b16 %v224, %v223
  %v290 = vpack.c.b16 %v226, %v225
  %v291 = vpack.c.b16 %v228, %v227
  %v292 = vpack.c.b16 %v230, %v229
  %v293 = vpack.c.b16 %v232, %v231
  %v294 = vpack.c.b16 %v234, %v233
  %v295 = vpack.c.b16 %v236, %v235
  %v296 = vpack.c.b16 %v238, %v237
  %v297 = vpack.c.b16 %v240, %v239
  %v298 = vpack.c.b16 %v242, %v241
  %v299 = vpack.c.b16 %v244, %v243
  %v300 = vpack.c.b16 %v246, %v245
  %v301 = vpack.c.b16 %v248, %v247
  %v302 = vpack.c.b16 %v250, %v249
  %v303 = vpack.c.b16 %v252, %v251
  %v304 = vpack.c.b16 %v254, %v253
  %v305 = vpack.c.b16 %v256, %v255
  %v306 = vpack.c.b16 %v258, %v257
  %v307 = vpack.c.b16 %v260, %v259
  %v308 = vpack.c.b16 %v262, %v261
  %v309 = vpack.c.b16 %v264, %v263
  %v310 = vpack.c.b16 %v266, %v265
  %v311 = vpack.c.b16 %v268, %v267
  %v312 = vpack.c.b16 %v270, %v269
  %v313 = vpack.c.b16 %v272, %v271
  %v314 = vpack.c.b16 %v274, %v273
  %v315 = vpack.c.b16 %v276, %v275
  %v316 = vpack.c.b16 %v278, %v277
  %v317 = vpack.c.b16 %v280, %v279
  %v318 = vpack.c.b16 %v282, %v281
  %vm355 = vcmask 523264
  %v357 = vsel %vm355, %v125, 0
  %359 = vmatprep.subr.bf16.mxu0 0
  %360 = vmatpush1.bf16.msra.mxu0 %v283
  %361 = vmatprep.subr.bf16.mxu0 0
  %362 = vmatpush1.bf16.msra.mxu0 %v284
  %363 = vmatprep.subr.bf16.mxu0 0
  %364 = vmatpush1.bf16.msra.mxu0 %v285
  %365 = vmatprep.subr.bf16.mxu0 0
  %366 = vmatpush1.bf16.msra.mxu0 %v286
  %367 = vmatprep.subr.bf16.mxu0 0
  %368 = vmatpush1.bf16.msra.mxu0 %v287
  %369 = vmatprep.subr.bf16.mxu0 0
  %370 = vmatpush1.bf16.msra.mxu0 %v288
  %371 = vmatprep.subr.bf16.mxu0 0
  %372 = vmatpush1.bf16.msra.mxu0 %v289
  %373 = vmatprep.subr.bf16.mxu0 0
  %374 = vmatpush1.bf16.msra.mxu0 %v290
  %375 = vmatprep.subr.bf16.mxu0 0
  %376 = vmatpush1.bf16.msra.mxu0 %v291
  %377 = vmatprep.subr.bf16.mxu0 0
  %378 = vmatpush1.bf16.msra.mxu0 %v292
  %379 = vmatprep.subr.bf16.mxu0 0
  %380 = vmatpush1.bf16.msra.mxu0 %v293
  %381 = vmatprep.subr.bf16.mxu0 0
  %382 = vmatpush1.bf16.msra.mxu0 %v294
  %383 = vmatprep.subr.bf16.mxu0 0
  %384 = vmatpush1.bf16.msra.mxu0 %v295
  %385 = vmatprep.subr.bf16.mxu0 0
  %386 = vmatpush1.bf16.msra.mxu0 %v296
  %387 = vmatprep.subr.bf16.mxu0 0
  %388 = vmatpush1.bf16.msra.mxu0 %v297
  %389 = vmatprep.subr.bf16.mxu0 0
  %390 = vmatpush1.bf16.msra.mxu0 %v298
  %391 = vmatprep.mubr.bf16.mxu0 %v132
  %392 = vmatmul.mubr.bf16.gmra.mrb[0].mxu0 %v118
  %v393 = vpop.f32.mrb[0].mxu0
  %v394 = vadd.f32 %v93, %v393
  %v395 = vpop.f32.mrb[0].mxu0
  %v396 = vpop.f32.mrb[0].mxu0
  %v397 = vpop.f32.mrb[0].mxu0
  %398 = vdwg.mxu0
  %399 = vmatprep.subr.bf16.mxu0 0
  %400 = vmatpush1.bf16.msra.mxu0 %v299
  %401 = vmatprep.subr.bf16.mxu0 0
  %402 = vmatpush1.bf16.msra.mxu0 %v300
  %403 = vmatprep.subr.bf16.mxu0 0
  %404 = vmatpush1.bf16.msra.mxu0 %v301
  %405 = vmatprep.subr.bf16.mxu0 0
  %406 = vmatpush1.bf16.msra.mxu0 %v302
  %407 = vmatprep.subr.bf16.mxu0 0
  %408 = vmatpush1.bf16.msra.mxu0 %v303
  %409 = vmatprep.subr.bf16.mxu0 0
  %410 = vmatpush1.bf16.msra.mxu0 %v304
  %411 = vmatprep.subr.bf16.mxu0 0
  %412 = vmatpush1.bf16.msra.mxu0 %v305
  %413 = vmatprep.subr.bf16.mxu0 0
  %414 = vmatpush1.bf16.msra.mxu0 %v306
  %415 = vmatprep.subr.bf16.mxu0 0
  %416 = vmatpush1.bf16.msra.mxu0 %v307
  %417 = vmatprep.subr.bf16.mxu0 0
  %418 = vmatpush1.bf16.msra.mxu0 %v308
  %419 = vmatprep.subr.bf16.mxu0 0
  %420 = vmatpush1.bf16.msra.mxu0 %v309
  %421 = vmatprep.subr.bf16.mxu0 0
  %422 = vmatpush1.bf16.msra.mxu0 %v310
  %423 = vmatprep.subr.bf16.mxu0 0
  %424 = vmatpush1.bf16.msra.mxu0 %v311
  %425 = vmatprep.subr.bf16.mxu0 0
  %426 = vmatpush1.bf16.msra.mxu0 %v312
  %427 = vmatprep.subr.bf16.mxu0 0
  %428 = vmatpush1.bf16.msra.mxu0 %v313
  %429 = vmatprep.subr.bf16.mxu0 0
  %430 = vmatpush1.bf16.msra.mxu0 %v314
  %431 = vmatprep.mubr.bf16.mxu0 %v134
  %432 = vmatmul.mubr.bf16.gmra.mrb[0].mxu0 %v133
  %v433 = vpop.f32.mrb[0].mxu0
  %v434 = vadd.f32 %v394, %v433
  %v435 = vpop.f32.mrb[0].mxu0
  %v436 = vpop.f32.mrb[0].mxu0
  %v437 = vpop.f32.mrb[0].mxu0
  %438 = vdwg.mxu0
  %439 = vmatprep.subr.bf16.mxu0 0
  %440 = vmatpush1.bf16.msra.mxu0 %v315
  %441 = vmatprep.subr.bf16.mxu0 0
  %442 = vmatpush1.bf16.msra.mxu0 %v316
  %443 = vmatprep.subr.bf16.mxu0 0
  %444 = vmatpush1.bf16.msra.mxu0 %v317
  %445 = vmatprep.subr.bf16.mxu0 0
  %446 = vmatpush1.bf16.msra.mxu0 %v318
  %447 = vmatprep.subr.bf16.mxu0 0
  %448 = vmatpush1.bf16.msra.mxu0 0
  %449 = vmatprep.subr.bf16.mxu0 0
  %450 = vmatpush1.bf16.msra.mxu0 0
  %451 = vmatprep.subr.bf16.mxu0 0
  %452 = vmatpush1.bf16.msra.mxu0 0
  %453 = vmatprep.subr.bf16.mxu0 0
  %454 = vmatpush1.bf16.msra.mxu0 0
  %455 = vmatprep.subr.bf16.mxu0 0
  %456 = vmatpush1.bf16.msra.mxu0 0
  %457 = vmatprep.subr.bf16.mxu0 0
  %458 = vmatpush1.bf16.msra.mxu0 0
  %459 = vmatprep.subr.bf16.mxu0 0
  %460 = vmatpush1.bf16.msra.mxu0 0
  %461 = vmatprep.subr.bf16.mxu0 0
  %462 = vmatpush1.bf16.msra.mxu0 0
  %463 = vmatprep.subr.bf16.mxu0 0
  %464 = vmatpush1.bf16.msra.mxu0 0
  %465 = vmatprep.subr.bf16.mxu0 0
  %466 = vmatpush1.bf16.msra.mxu0 0
  %467 = vmatprep.subr.bf16.mxu0 0
  %468 = vmatpush1.bf16.msra.mxu0 0
  %469 = vmatprep.subr.bf16.mxu0 0
  %470 = vmatpush1.bf16.msra.mxu0 0
  %471 = vmatprep.mubr.bf16.mxu0 0
  %472 = vmatmul.mubr.bf16.gmra.mrb[0].mxu0 %v357
  %v473 = vpop.f32.mrb[0].mxu0
  %v474 = vadd.f32 %v434, %v473
  %v475 = vpop.f32.mrb[0].mxu0
  %v476 = vpop.f32.mrb[0].mxu0
  %v477 = vpop.f32.mrb[0].mxu0
  %478 = vdwg.mxu0
  %v479 = vmax.f32 %v474, 0.0
  %v480 = vpack.c.bf16 %v479, %v479
  %vm481 = vcmask 516096
  %482 = vst.msk [vmem:[%s3] sm:$0x1] %vm481, %v480
  // Predicated region
  $region14: #{dqn_conv_duel_forward.7} parent=0 // pred_check
    _
  $region15: #{dqn_conv_duel_forward.7} parent=0 // pred_check_branch
    %484 = sbr.rel (0) target = $region17
  $region16: #{dqn_conv_duel_forward.7} parent=0 // pred_region
    _
  $region17: #{dqn_conv_duel_forward.7} parent=0 // pred_fallthru
    _
  // Predicated region
  $region18: #{dqn_conv_duel_forward.7} parent=0 // pred_check
    _
  $region19: #{dqn_conv_duel_forward.7} parent=0 // pred_check_branch
    %486 = sbr.rel (0) target = $region21
  $region20: #{dqn_conv_duel_forward.7} parent=0 // pred_region
    _
  $region21: #{dqn_conv_duel_forward.7} parent=0 // pred_fallthru
    _

// kernel: dqn_conv_duel_forward.8
$region0: #{dqn_conv_duel_forward.8}
  #allocation0 [shape = 'u32[]', space=smem, size = 0x4, offset = 0x4, fixed_abs, tag = 'smem constant byte address 0x4 - core index']
  #allocation1 [shape = 'u32[144,128]{1,0:T(1,128)}', space=vmem, size = 0x12000, scoped, tag = 'internal scratch']
  %s0 = inlined_call_operand.vmem [shape: bf16[2,64], index: 0, kind: input, shape index: {}]
  %s1 = inlined_call_operand.vmem [shape: bf16[64,1024], index: 1, kind: input, shape index: {}]
  %s2 = inlined_call_operand.vmem [shape: f32[1,1024], index: 2, kind: input, shape index: {}]
  %s3 = inlined_call_operand.vmem [shape: bf16[2,1024], index: 3, kind: output, shape index: {}]
  %s4 = sld [smem:[#allocation0]]
  $region22: #{dqn_conv_duel_forward.8} parent=0
    _
  %s6 = ssub.s32 1, %s4
  %s7 = scalar_select 0, %s6, %s4
  // Predicated region
  $region2: #{dqn_conv_duel_forward.8} parent=0 // pred_check
    _
  $region3: #{dqn_conv_duel_forward.8} parent=0 // pred_check_branch
    %9 = sbr.rel (0) target = $region5
  $region4: #{dqn_conv_duel_forward.8} parent=0 // pred_region
    _
  $region5: #{dqn_conv_duel_forward.8} parent=0 // pred_fallthru
    _
  // Predicated region
  $region6: #{dqn_conv_duel_forward.8} parent=0 // pred_check
    _
  $region7: #{dqn_conv_duel_forward.8} parent=0 // pred_check_branch
    %11 = sbr.rel (0) target = $region9
  $region8: #{dqn_conv_duel_forward.8} parent=0 // pred_region
    _
  $region9: #{dqn_conv_duel_forward.8} parent=0 // pred_fallthru
    _
  // Predicated region
  $region10: #{dqn_conv_duel_forward.8} parent=0 // pred_check
    _
  $region11: #{dqn_conv_duel_forward.8} parent=0 // pred_check_branch
    %13 = sbr.rel (0) target = $region13
  $region12: #{dqn_conv_duel_forward.8} parent=0 // pred_region
    _
  $region13: #{dqn_conv_duel_forward.8} parent=0 // pred_fallthru
    _
  %v15 = vld [vmem:[%s0] sm:$0x1]
  %v16 = vld [vmem:[%s1] sm:$0xff]
  %v17 = vld [vmem:[%s1 + $0x8] sm:$0xff]
  %v18 = vld [vmem:[%s1 + $0x10] sm:$0xff]
  %v19 = vld [vmem:[%s1 + $0x18] sm:$0xff]
  %v20 = vld [vmem:[%s1 + $0x20] sm:$0xff]
  %v21 = vld [vmem:[%s1 + $0x28] sm:$0xff]
  %v22 = vld [vmem:[%s1 + $0x30] sm:$0xff]
  %v23 = vld [vmem:[%s1 + $0x38] sm:$0xff]
  %v24 = vld [vmem:[%s1 + $0x40] sm:$0xff]
  %v25 = vld [vmem:[%s1 + $0x48] sm:$0xff]
  %v26 = vld [vmem:[%s1 + $0x50] sm:$0xff]
  %v27 = vld [vmem:[%s1 + $0x58] sm:$0xff]
  %v28 = vld [vmem:[%s1 + $0x60] sm:$0xff]
  %v29 = vld [vmem:[%s1 + $0x68] sm:$0xff]
  %v30 = vld [vmem:[%s1 + $0x70] sm:$0xff]
  %v31 = vld [vmem:[%s1 + $0x78] sm:$0xff]
  %v32 = vld [vmem:[%s1 + $0x80] sm:$0xff]
  %v33 = vld [vmem:[%s1 + $0x88] sm:$0xff]
  %v34 = vld [vmem:[%s1 + $0x90] sm:$0xff]
  %v35 = vld [vmem:[%s1 + $0x98] sm:$0xff]
  %v36 = vld [vmem:[%s1 + $0xa0] sm:$0xff]
  %v37 = vld [vmem:[%s1 + $0xa8] sm:$0xff]
  %v38 = vld [vmem:[%s1 + $0xb0] sm:$0xff]
  %v39 = vld [vmem:[%s1 + $0xb8] sm:$0xff]
  %v40 = vld [vmem:[%s1 + $0xc0] sm:$0xff]
  %v41 = vld [vmem:[%s1 + $0xc8] sm:$0xff]
  %v42 = vld [vmem:[%s1 + $0xd0] sm:$0xff]
  %v43 = vld [vmem:[%s1 + $0xd8] sm:$0xff]
  %v44 = vld [vmem:[%s1 + $0xe0] sm:$0xff]
  %v45 = vld [vmem:[%s1 + $0xe8] sm:$0xff]
  %v46 = vld [vmem:[%s1 + $0xf0] sm:$0xff]
  %v47 = vld [vmem:[%s1 + $0xf8] sm:$0xff]
  %v48 = vld [vmem:[%s2] sm:$0xff]
  %v50 = vlaneseq
  %v51 = vshrl.u32 %v50, 7
  %v52 = vsub.s32 0, %v51
  %v53 = vrot.slane %v48, %v52
  %v54 = vlaneseq
  %v55 = vshrl.u32 %v54, 7
  %v56 = vsub.s32 1, %v55
  %v57 = vrot.slane %v48, %v56
  %v58 = vlaneseq
  %v59 = vshrl.u32 %v58, 7
  %v60 = vsub.s32 2, %v59
  %v61 = vrot.slane %v48, %v60
  %v62 = vlaneseq
  %v63 = vshrl.u32 %v62, 7
  %v64 = vsub.s32 3, %v63
  %v65 = vrot.slane %v48, %v64
  %v66 = vlaneseq
  %v67 = vshrl.u32 %v66, 7
  %v68 = vsub.s32 4, %v67
  %v69 = vrot.slane %v48, %v68
  %v70 = vlaneseq
  %v71 = vshrl.u32 %v70, 7
  %v72 = vsub.s32 5, %v71
  %v73 = vrot.slane %v48, %v72
  %v74 = vlaneseq
  %v75 = vshrl.u32 %v74, 7
  %v76 = vsub.s32 6, %v75
  %v77 = vrot.slane %v48, %v76
  %v78 = vlaneseq
  %v79 = vshrl.u32 %v78, 7
  %v80 = vsub.s32 7, %v79
  %v81 = vrot.slane %v48, %v80
  %v122 = vunpack.c.l.b16 %v16
  %v123 = vunpack.c.h.b16 %v16
  %v124 = vunpack.c.l.b16 %v17
  %v125 = vunpack.c.h.b16 %v17
  %v126 = vunpack.c.l.b16 %v18
  %v127 = vunpack.c.h.b16 %v18
  %v128 = vunpack.c.l.b16 %v19
  %v129 = vunpack.c.h.b16 %v19
  %v130 = vunpack.c.l.b16 %v20
  %v131 = vunpack.c.h.b16 %v20
  %v132 = vunpack.c.l.b16 %v21
  %v133 = vunpack.c.h.b16 %v21
  %v134 = vunpack.c.l.b16 %v22
  %v135 = vunpack.c.h.b16 %v22
  %v136 = vunpack.c.l.b16 %v23
  %v137 = vunpack.c.h.b16 %v23
  %v138 = vunpack.c.l.b16 %v24
  %v139 = vunpack.c.h.b16 %v24
  %v140 = vunpack.c.l.b16 %v25
  %v141 = vunpack.c.h.b16 %v25
  %v142 = vunpack.c.l.b16 %v26
  %v143 = vunpack.c.h.b16 %v26
  %v144 = vunpack.c.l.b16 %v27
  %v145 = vunpack.c.h.b16 %v27
  %v146 = vunpack.c.l.b16 %v28
  %v147 = vunpack.c.h.b16 %v28
  %v148 = vunpack.c.l.b16 %v29
  %v149 = vunpack.c.h.b16 %v29
  %v150 = vunpack.c.l.b16 %v30
  %v151 = vunpack.c.h.b16 %v30
  %v152 = vunpack.c.l.b16 %v31
  %v153 = vunpack.c.h.b16 %v31
  %v154 = vunpack.c.l.b16 %v32
  %v155 = vunpack.c.h.b16 %v32
  %v156 = vunpack.c.l.b16 %v33
  %v157 = vunpack.c.h.b16 %v33
  %v158 = vunpack.c.l.b16 %v34
  %v159 = vunpack.c.h.b16 %v34
  %v160 = vunpack.c.l.b16 %v35
  %v161 = vunpack.c.h.b16 %v35
  %v162 = vunpack.c.l.b16 %v36
  %v163 = vunpack.c.h.b16 %v36
  %v164 = vunpack.c.l.b16 %v37
  %v165 = vunpack.c.h.b16 %v37
  %v166 = vunpack.c.l.b16 %v38
  %v167 = vunpack.c.h.b16 %v38
  %v168 = vunpack.c.l.b16 %v39
  %v169 = vunpack.c.h.b16 %v39
  %v170 = vunpack.c.l.b16 %v40
  %v171 = vunpack.c.h.b16 %v40
  %v172 = vunpack.c.l.b16 %v41
  %v173 = vunpack.c.h.b16 %v41
  %v174 = vunpack.c.l.b16 %v42
  %v175 = vunpack.c.h.b16 %v42
  %v176 = vunpack.c.l.b16 %v43
  %v177 = vunpack.c.h.b16 %v43
  %v178 = vunpack.c.l.b16 %v44
  %v179 = vunpack.c.h.b16 %v44
  %v180 = vunpack.c.l.b16 %v45
  %v181 = vunpack.c.h.b16 %v45
  %v182 = vunpack.c.l.b16 %v46
  %v183 = vunpack.c.h.b16 %v46
  %v184 = vunpack.c.l.b16 %v47
  %v185 = vunpack.c.h.b16 %v47
  %v186 = vpack.c.b16 %v130, %v122
  %v187 = vpack.c.b16 %v131, %v123
  %v188 = vpack.c.b16 %v132, %v124
  %v189 = vpack.c.b16 %v133, %v125
  %v190 = vpack.c.b16 %v134, %v126
  %v191 = vpack.c.b16 %v135, %v127
  %v192 = vpack.c.b16 %v136, %v128
  %v193 = vpack.c.b16 %v137, %v129
  %v194 = vpack.c.b16 %v146, %v138
  %v195 = vpack.c.b16 %v147, %v139
  %v196 = vpack.c.b16 %v148, %v140
  %v197 = vpack.c.b16 %v149, %v141
  %v198 = vpack.c.b16 %v150, %v142
  %v199 = vpack.c.b16 %v151, %v143
  %v200 = vpack.c.b16 %v152, %v144
  %v201 = vpack.c.b16 %v153, %v145
  %v202 = vpack.c.b16 %v162, %v154
  %v203 = vpack.c.b16 %v163, %v155
  %v204 = vpack.c.b16 %v164, %v156
  %v205 = vpack.c.b16 %v165, %v157
  %v206 = vpack.c.b16 %v166, %v158
  %v207 = vpack.c.b16 %v167, %v159
  %v208 = vpack.c.b16 %v168, %v160
  %v209 = vpack.c.b16 %v169, %v161
  %v210 = vpack.c.b16 %v178, %v170
  %v211 = vpack.c.b16 %v179, %v171
  %v212 = vpack.c.b16 %v180, %v172
  %v213 = vpack.c.b16 %v181, %v173
  %v214 = vpack.c.b16 %v182, %v174
  %v215 = vpack.c.b16 %v183, %v175
  %v216 = vpack.c.b16 %v184, %v176
  %v217 = vpack.c.b16 %v185, %v177
  %vm250 = vcmask 523264
  %v252 = vsel %vm250, %v15, 0
  %254 = vmatprep.subr.bf16.mxu0 %v187
  %255 = vmatpush1.bf16.msra.mxu0 %v186
  %256 = vmatprep.subr.bf16.mxu0 %v195
  %257 = vmatpush1.bf16.msra.mxu0 %v194
  %258 = vmatprep.subr.bf16.mxu0 %v203
  %259 = vmatpush1.bf16.msra.mxu0 %v202
  %260 = vmatprep.subr.bf16.mxu0 %v211
  %261 = vmatpush1.bf16.msra.mxu0 %v210
  %262 = vmatprep.subr.bf16.mxu0 0
  %263 = vmatpush1.bf16.msra.mxu0 0
  %264 = vmatprep.subr.bf16.mxu0 0
  %265 = vmatpush1.bf16.msra.mxu0 0
  %266 = vmatprep.subr.bf16.mxu0 0
  %267 = vmatpush1.bf16.msra.mxu0 0
  %268 = vmatprep.subr.bf16.mxu0 0
  %269 = vmatpush1.bf16.msra.mxu0 0
  %270 = vmatprep.subr.bf16.mxu0 0
  %271 = vmatpush1.bf16.msra.mxu0 0
  %272 = vmatprep.subr.bf16.mxu0 0
  %273 = vmatpush1.bf16.msra.mxu0 0
  %274 = vmatprep.subr.bf16.mxu0 0
  %275 = vmatpush1.bf16.msra.mxu0 0
  %276 = vmatprep.subr.bf16.mxu0 0
  %277 = vmatpush1.bf16.msra.mxu0 0
  %278 = vmatprep.subr.bf16.mxu0 0
  %279 = vmatpush1.bf16.msra.mxu0 0
  %280 = vmatprep.subr.bf16.mxu0 0
  %281 = vmatpush1.bf16.msra.mxu0 0
  %282 = vmatprep.subr.bf16.mxu0 0
  %283 = vmatpush1.bf16.msra.mxu0 0
  %284 = vmatprep.subr.bf16.mxu0 0
  %285 = vmatpush1.bf16.msra.mxu0 0
  %286 = vmatprep.mubr.bf16.mxu0 0
  %287 = vmatmul.mubr.bf16.gmra.mrb[0].mxu0 %v252
  %v288 = vpop.f32.mrb[0].mxu0
  %v289 = vadd.f32 %v53, %v288
  %v290 = vpop.f32.mrb[0].mxu0
  %v291 = vadd.f32 %v57, %v290
  %v292 = vpop.f32.mrb[0].mxu0
  %v293 = vpop.f32.mrb[0].mxu0
  %294 = vdwg.mxu0
  %295 = vmatprep.subr.bf16.mxu0 %v189
  %296 = vmatpush1.bf16.msra.mxu0 %v188
  %297 = vmatprep.subr.bf16.mxu0 %v197
  %298 = vmatpush1.bf16.msra.mxu0 %v196
  %299 = vmatprep.subr.bf16.mxu0 %v205
  %300 = vmatpush1.bf16.msra.mxu0 %v204
  %301 = vmatprep.subr.bf16.mxu0 %v213
  %302 = vmatpush1.bf16.msra.mxu0 %v212
  %303 = vmatprep.subr.bf16.mxu0 0
  %304 = vmatpush1.bf16.msra.mxu0 0
  %305 = vmatprep.subr.bf16.mxu0 0
  %306 = vmatpush1.bf16.msra.mxu0 0
  %307 = vmatprep.subr.bf16.mxu0 0
  %308 = vmatpush1.bf16.msra.mxu0 0
  %309 = vmatprep.subr.bf16.mxu0 0
  %310 = vmatpush1.bf16.msra.mxu0 0
  %311 = vmatprep.subr.bf16.mxu0 0
  %312 = vmatpush1.bf16.msra.mxu0 0
  %313 = vmatprep.subr.bf16.mxu0 0
  %314 = vmatpush1.bf16.msra.mxu0 0
  %315 = vmatprep.subr.bf16.mxu0 0
  %316 = vmatpush1.bf16.msra.mxu0 0
  %317 = vmatprep.subr.bf16.mxu0 0
  %318 = vmatpush1.bf16.msra.mxu0 0
  %319 = vmatprep.subr.bf16.mxu0 0
  %320 = vmatpush1.bf16.msra.mxu0 0
  %321 = vmatprep.subr.bf16.mxu0 0
  %322 = vmatpush1.bf16.msra.mxu0 0
  %323 = vmatprep.subr.bf16.mxu0 0
  %324 = vmatpush1.bf16.msra.mxu0 0
  %325 = vmatprep.subr.bf16.mxu0 0
  %326 = vmatpush1.bf16.msra.mxu0 0
  %327 = vmatprep.mubr.bf16.mxu0 0
  %328 = vmatmul.mubr.bf16.gmra.mrb[0].mxu0 %v252
  %v329 = vpop.f32.mrb[0].mxu0
  %v330 = vadd.f32 %v61, %v329
  %v331 = vpop.f32.mrb[0].mxu0
  %v332 = vadd.f32 %v65, %v331
  %v333 = vpop.f32.mrb[0].mxu0
  %v334 = vpop.f32.mrb[0].mxu0
  %335 = vdwg.mxu0
  %336 = vmatprep.subr.bf16.mxu0 %v191
  %337 = vmatpush1.bf16.msra.mxu0 %v190
  %338 = vmatprep.subr.bf16.mxu0 %v199
  %339 = vmatpush1.bf16.msra.mxu0 %v198
  %340 = vmatprep.subr.bf16.mxu0 %v207
  %341 = vmatpush1.bf16.msra.mxu0 %v206
  %342 = vmatprep.subr.bf16.mxu0 %v215
  %343 = vmatpush1.bf16.msra.mxu0 %v214
  %344 = vmatprep.subr.bf16.mxu0 0
  %345 = vmatpush1.bf16.msra.mxu0 0
  %346 = vmatprep.subr.bf16.mxu0 0
  %347 = vmatpush1.bf16.msra.mxu0 0
  %348 = vmatprep.subr.bf16.mxu0 0
  %349 = vmatpush1.bf16.msra.mxu0 0
  %350 = vmatprep.subr.bf16.mxu0 0
  %351 = vmatpush1.bf16.msra.mxu0 0
  %352 = vmatprep.subr.bf16.mxu0 0
  %353 = vmatpush1.bf16.msra.mxu0 0
  %354 = vmatprep.subr.bf16.mxu0 0
  %355 = vmatpush1.bf16.msra.mxu0 0
  %356 = vmatprep.subr.bf16.mxu0 0
  %357 = vmatpush1.bf16.msra.mxu0 0
  %358 = vmatprep.subr.bf16.mxu0 0
  %359 = vmatpush1.bf16.msra.mxu0 0
  %360 = vmatprep.subr.bf16.mxu0 0
  %361 = vmatpush1.bf16.msra.mxu0 0
  %362 = vmatprep.subr.bf16.mxu0 0
  %363 = vmatpush1.bf16.msra.mxu0 0
  %364 = vmatprep.subr.bf16.mxu0 0
  %365 = vmatpush1.bf16.msra.mxu0 0
  %366 = vmatprep.subr.bf16.mxu0 0
  %367 = vmatpush1.bf16.msra.mxu0 0
  %368 = vmatprep.mubr.bf16.mxu0 0
  %369 = vmatmul.mubr.bf16.gmra.mrb[0].mxu0 %v252
  %v370 = vpop.f32.mrb[0].mxu0
  %v371 = vadd.f32 %v69, %v370
  %v372 = vpop.f32.mrb[0].mxu0
  %v373 = vadd.f32 %v73, %v372
  %v374 = vpop.f32.mrb[0].mxu0
  %v375 = vpop.f32.mrb[0].mxu0
  %376 = vdwg.mxu0
  %377 = vmatprep.subr.bf16.mxu0 %v193
  %378 = vmatpush1.bf16.msra.mxu0 %v192
  %379 = vmatprep.subr.bf16.mxu0 %v201
  %380 = vmatpush1.bf16.msra.mxu0 %v200
  %381 = vmatprep.subr.bf16.mxu0 %v209
  %382 = vmatpush1.bf16.msra.mxu0 %v208
  %383 = vmatprep.subr.bf16.mxu0 %v217
  %384 = vmatpush1.bf16.msra.mxu0 %v216
  %385 = vmatprep.subr.bf16.mxu0 0
  %386 = vmatpush1.bf16.msra.mxu0 0
  %387 = vmatprep.subr.bf16.mxu0 0
  %388 = vmatpush1.bf16.msra.mxu0 0
  %389 = vmatprep.subr.bf16.mxu0 0
  %390 = vmatpush1.bf16.msra.mxu0 0
  %391 = vmatprep.subr.bf16.mxu0 0
  %392 = vmatpush1.bf16.msra.mxu0 0
  %393 = vmatprep.subr.bf16.mxu0 0
  %394 = vmatpush1.bf16.msra.mxu0 0
  %395 = vmatprep.subr.bf16.mxu0 0
  %396 = vmatpush1.bf16.msra.mxu0 0
  %397 = vmatprep.subr.bf16.mxu0 0
  %398 = vmatpush1.bf16.msra.mxu0 0
  %399 = vmatprep.subr.bf16.mxu0 0
  %400 = vmatpush1.bf16.msra.mxu0 0
  %401 = vmatprep.subr.bf16.mxu0 0
  %402 = vmatpush1.bf16.msra.mxu0 0
  %403 = vmatprep.subr.bf16.mxu0 0
  %404 = vmatpush1.bf16.msra.mxu0 0
  %405 = vmatprep.subr.bf16.mxu0 0
  %406 = vmatpush1.bf16.msra.mxu0 0
  %407 = vmatprep.subr.bf16.mxu0 0
  %408 = vmatpush1.bf16.msra.mxu0 0
  %409 = vmatprep.mubr.bf16.mxu0 0
  %410 = vmatmul.mubr.bf16.gmra.mrb[0].mxu0 %v252
  %v411 = vpop.f32.mrb[0].mxu0
  %v412 = vadd.f32 %v77, %v411
  %v413 = vpop.f32.mrb[0].mxu0
  %v414 = vadd.f32 %v81, %v413
  %v415 = vpop.f32.mrb[0].mxu0
  %v416 = vpop.f32.mrb[0].mxu0
  %417 = vdwg.mxu0
  %v418 = vmax.f32 %v289, 0.0
  %v419 = vmax.f32 %v291, 0.0
  %v420 = vmax.f32 %v330, 0.0
  %v421 = vmax.f32 %v332, 0.0
  %v422 = vmax.f32 %v371, 0.0
  %v423 = vmax.f32 %v373, 0.0
  %v424 = vmax.f32 %v412, 0.0
  %v425 = vmax.f32 %v414, 0.0
  %v426 = vpack.c.bf16 %v418, %v418
  %v427 = vpack.c.bf16 %v419, %v419
  %v428 = vpack.c.bf16 %v420, %v420
  %v429 = vpack.c.bf16 %v421, %v421
  %v430 = vpack.c.bf16 %v422, %v422
  %v431 = vpack.c.bf16 %v423, %v423
  %v432 = vpack.c.bf16 %v424, %v424
  %v433 = vpack.c.bf16 %v425, %v425
  %v442 = vcombine.low %v426, %v427
  %v443 = vcombine.low %v428, %v429
  %v444 = vcombine.low %v430, %v431
  %v445 = vcombine.low %v432, %v433
  %v447 = vunpack.c.l.s4 1966171168
  %v448 = vunpack.c.0.s8 %v447
  %v449 = vlaneseq
  %v450 = vshrl.u32 %v449, 7
  %v451 = vsub.s32 %v448, %v450
  %v452 = vrot.slane %v442, %v451
  %v454 = vunpack.c.l.s4 1966171168
  %v455 = vunpack.c.0.s8 %v454
  %v456 = vlaneseq
  %v457 = vshrl.u32 %v456, 7
  %v458 = vsub.s32 %v455, %v457
  %v459 = vrot.slane %v443, %v458
  %v461 = vunpack.c.l.s4 1966171168
  %v462 = vunpack.c.0.s8 %v461
  %v463 = vlaneseq
  %v464 = vshrl.u32 %v463, 7
  %v465 = vsub.s32 %v462, %v464
  %v466 = vrot.slane %v444, %v465
  %v468 = vunpack.c.l.s4 1966171168
  %v469 = vunpack.c.0.s8 %v468
  %v470 = vlaneseq
  %v471 = vshrl.u32 %v470, 7
  %v472 = vsub.s32 %v469, %v471
  %v473 = vrot.slane %v445, %v472
  %v474 = vcombine.low %v452, %v459
  %v475 = vcombine.low %v466, %v473
  %v477 = vunpack.c.l.s4 1966171168
  %v478 = vunpack.c.0.s8 %v477
  %v479 = vlaneseq
  %v480 = vshrl.u32 %v479, 7
  %v481 = vsub.s32 %v478, %v480
  %v482 = vrot.slane %v474, %v481
  %v484 = vunpack.c.l.s4 1966171168
  %v485 = vunpack.c.0.s8 %v484
  %v486 = vlaneseq
  %v487 = vshrl.u32 %v486, 7
  %v488 = vsub.s32 %v485, %v487
  %v489 = vrot.slane %v475, %v488
  %v490 = vcombine.low %v482, %v489
  %492 = vst [vmem:[%s3] sm:$0xff] %v490
  // Predicated region
  $region14: #{dqn_conv_duel_forward.8} parent=0 // pred_check
    _
  $region15: #{dqn_conv_duel_forward.8} parent=0 // pred_check_branch
    %494 = sbr.rel (0) target = $region17
  $region16: #{dqn_conv_duel_forward.8} parent=0 // pred_region
    _
  $region17: #{dqn_conv_duel_forward.8} parent=0 // pred_fallthru
    _
  // Predicated region
  $region18: #{dqn_conv_duel_forward.8} parent=0 // pred_check
    _
  $region19: #{dqn_conv_duel_forward.8} parent=0 // pred_check_branch
    %496 = sbr.rel (0) target = $region21
  $region20: #{dqn_conv_duel_forward.8} parent=0 // pred_region
    _
  $region21: #{dqn_conv_duel_forward.8} parent=0 // pred_fallthru
    _

// kernel: dqn_conv_duel_forward.9
$region0: #{dqn_conv_duel_forward.9}
  #allocation0 [shape = 'u32[]', space=smem, size = 0x4, offset = 0x4, fixed_abs, tag = 'smem constant byte address 0x4 - core index']
  #allocation1 [shape = 'u32[144,128]{1,0:T(1,128)}', space=vmem, size = 0x12000, scoped, tag = 'internal scratch']
  %s0 = inlined_call_operand.vmem [shape: bf16[2,1024], index: 0, kind: input, shape index: {}]
  %s1 = inlined_call_operand.vmem [shape: bf16[1024,7], index: 1, kind: input, shape index: {}]
  %s2 = inlined_call_operand.vmem [shape: f32[1,7], index: 2, kind: input, shape index: {}]
  %s3 = inlined_call_operand.hbm [shape: f32[2,6], index: 3, kind: output, shape index: {}]
  %s4 = sld [smem:[#allocation0]]
  $region22: #{dqn_conv_duel_forward.9} parent=0
    _
  %s6 = ssub.s32 1, %s4
  %s7 = scalar_select 0, %s6, %s4
  $region1: #{dqn_conv_duel_forward.9} parent=0
    #allocation2 [shape = 'u8[1024]{0}', space=vmem, size = 0x400, scoped, tag = 'output window, operand 0, single buffered']
    #allocation3 [shape = 's32[1]{0}', space=sflag, size = 0x4, scoped, tag = 'scoped memory for dqn_conv_duel_forward.9']
    %8 = vsyncpa [#allocation3], 0
    // Predicated region
    $region2: #{dqn_conv_duel_forward.9} parent=1 // pred_check
      _
    $region3: #{dqn_conv_duel_forward.9} parent=1 // pred_check_branch
      %10 = sbr.rel (0) target = $region5
    $region4: #{dqn_conv_duel_forward.9} parent=1 // pred_region
      _
    $region5: #{dqn_conv_duel_forward.9} parent=1 // pred_fallthru
      _
    // Predicated region
    $region6: #{dqn_conv_duel_forward.9} parent=1 // pred_check
      _
    $region7: #{dqn_conv_duel_forward.9} parent=1 // pred_check_branch
      %12 = sbr.rel (0) target = $region9
    $region8: #{dqn_conv_duel_forward.9} parent=1 // pred_region
      _
    $region9: #{dqn_conv_duel_forward.9} parent=1 // pred_fallthru
      _
    // Predicated region
    $region10: #{dqn_conv_duel_forward.9} parent=1 // pred_check
      _
    $region11: #{dqn_conv_duel_forward.9} parent=1 // pred_check_branch
      %14 = sbr.rel (0) target = $region13
    $region12: #{dqn_conv_duel_forward.9} parent=1 // pred_region
      _
    $region13: #{dqn_conv_duel_forward.9} parent=1 // pred_fallthru
      _
    %v16 = vld [vmem:[%s0] sm:$0xff]
    %v17 = vld [vmem:[%s1] sm:$0xf]
    %v18 = vld [vmem:[%s1 + $0x4] sm:$0xf]
    %v19 = vld [vmem:[%s1 + $0x8] sm:$0xf]
    %v20 = vld [vmem:[%s1 + $0xc] sm:$0xf]
    %v21 = vld [vmem:[%s1 + $0x10] sm:$0xf]
    %v22 = vld [vmem:[%s1 + $0x14] sm:$0xf]
    %v23 = vld [vmem:[%s1 + $0x18] sm:$0xf]
    %v24 = vld [vmem:[%s1 + $0x1c] sm:$0xf]
    %v25 = vld [vmem:[%s1 + $0x20] sm:$0xf]
    %v26 = vld [vmem:[%s1 + $0x24] sm:$0xf]
    %v27 = vld [vmem:[%s1 + $0x28] sm:$0xf]
    %v28 = vld [vmem:[%s1 + $0x2c] sm:$0xf]
    %v29 = vld [vmem:[%s1 + $0x30] sm:$0xf]
    %v30 = vld [vmem:[%s1 + $0x34] sm:$0xf]
    %v31 = vld [vmem:[%s1 + $0x38] sm:$0xf]
    %v32 = vld [vmem:[%s1 + $0x3c] sm:$0xf]
    %v33 = vld [vmem:[%s1 + $0x40] sm:$0xf]
    %v34 = vld [vmem:[%s1 + $0x44] sm:$0xf]
    %v35 = vld [vmem:[%s1 + $0x48] sm:$0xf]
    %v36 = vld [vmem:[%s1 + $0x4c] sm:$0xf]
    %v37 = vld [vmem:[%s1 + $0x50] sm:$0xf]
    %v38 = vld [vmem:[%s1 + $0x54] sm:$0xf]
    %v39 = vld [vmem:[%s1 + $0x58] sm:$0xf]
    %v40 = vld [vmem:[%s1 + $0x5c] sm:$0xf]
    %v41 = vld [vmem:[%s1 + $0x60] sm:$0xf]
    %v42 = vld [vmem:[%s1 + $0x64] sm:$0xf]
    %v43 = vld [vmem:[%s1 + $0x68] sm:$0xf]
    %v44 = vld [vmem:[%s1 + $0x6c] sm:$0xf]
    %v45 = vld [vmem:[%s1 + $0x70] sm:$0xf]
    %v46 = vld [vmem:[%s1 + $0x74] sm:$0xf]
    %v47 = vld [vmem:[%s1 + $0x78] sm:$0xf]
    %v48 = vld [vmem:[%s1 + $0x7c] sm:$0xf]
    %v49 = vld [vmem:[%s1 + $0x80] sm:$0xf]
    %v50 = vld [vmem:[%s1 + $0x84] sm:$0xf]
    %v51 = vld [vmem:[%s1 + $0x88] sm:$0xf]
    %v52 = vld [vmem:[%s1 + $0x8c] sm:$0xf]
    %v53 = vld [vmem:[%s1 + $0x90] sm:$0xf]
    %v54 = vld [vmem:[%s1 + $0x94] sm:$0xf]
    %v55 = vld [vmem:[%s1 + $0x98] sm:$0xf]
    %v56 = vld [vmem:[%s1 + $0x9c] sm:$0xf]
    %v57 = vld [vmem:[%s1 + $0xa0] sm:$0xf]
    %v58 = vld [vmem:[%s1 + $0xa4] sm:$0xf]
    %v59 = vld [vmem:[%s1 + $0xa8] sm:$0xf]
    %v60 = vld [vmem:[%s1 + $0xac] sm:$0xf]
    %v61 = vld [vmem:[%s1 + $0xb0] sm:$0xf]
    %v62 = vld [vmem:[%s1 + $0xb4] sm:$0xf]
    %v63 = vld [vmem:[%s1 + $0xb8] sm:$0xf]
    %v64 = vld [vmem:[%s1 + $0xbc] sm:$0xf]
    %v65 = vld [vmem:[%s1 + $0xc0] sm:$0xf]
    %v66 = vld [vmem:[%s1 + $0xc4] sm:$0xf]
    %v67 = vld [vmem:[%s1 + $0xc8] sm:$0xf]
    %v68 = vld [vmem:[%s1 + $0xcc] sm:$0xf]
    %v69 = vld [vmem:[%s1 + $0xd0] sm:$0xf]
    %v70 = vld [vmem:[%s1 + $0xd4] sm:$0xf]
    %v71 = vld [vmem:[%s1 + $0xd8] sm:$0xf]
    %v72 = vld [vmem:[%s1 + $0xdc] sm:$0xf]
    %v73 = vld [vmem:[%s1 + $0xe0] sm:$0xf]
    %v74 = vld [vmem:[%s1 + $0xe4] sm:$0xf]
    %v75 = vld [vmem:[%s1 + $0xe8] sm:$0xf]
    %v76 = vld [vmem:[%s1 + $0xec] sm:$0xf]
    %v77 = vld [vmem:[%s1 + $0xf0] sm:$0xf]
    %v78 = vld [vmem:[%s1 + $0xf4] sm:$0xf]
    %v79 = vld [vmem:[%s1 + $0xf8] sm:$0xf]
    %v80 = vld [vmem:[%s1 + $0xfc] sm:$0xf]
    %v81 = vld [vmem:[%s1 + $0x100] sm:$0xf]
    %v82 = vld [vmem:[%s1 + $0x104] sm:$0xf]
    %v83 = vld [vmem:[%s1 + $0x108] sm:$0xf]
    %v84 = vld [vmem:[%s1 + $0x10c] sm:$0xf]
    %v85 = vld [vmem:[%s1 + $0x110] sm:$0xf]
    %v86 = vld [vmem:[%s1 + $0x114] sm:$0xf]
    %v87 = vld [vmem:[%s1 + $0x118] sm:$0xf]
    %v88 = vld [vmem:[%s1 + $0x11c] sm:$0xf]
    %v89 = vld [vmem:[%s1 + $0x120] sm:$0xf]
    %v90 = vld [vmem:[%s1 + $0x124] sm:$0xf]
    %v91 = vld [vmem:[%s1 + $0x128] sm:$0xf]
    %v92 = vld [vmem:[%s1 + $0x12c] sm:$0xf]
    %v93 = vld [vmem:[%s1 + $0x130] sm:$0xf]
    %v94 = vld [vmem:[%s1 + $0x134] sm:$0xf]
    %v95 = vld [vmem:[%s1 + $0x138] sm:$0xf]
    %v96 = vld [vmem:[%s1 + $0x13c] sm:$0xf]
    %v97 = vld [vmem:[%s1 + $0x140] sm:$0xf]
    %v98 = vld [vmem:[%s1 + $0x144] sm:$0xf]
    %v99 = vld [vmem:[%s1 + $0x148] sm:$0xf]
    %v100 = vld [vmem:[%s1 + $0x14c] sm:$0xf]
    %v101 = vld [vmem:[%s1 + $0x150] sm:$0xf]
    %v102 = vld [vmem:[%s1 + $0x154] sm:$0xf]
    %v103 = vld [vmem:[%s1 + $0x158] sm:$0xf]
    %v104 = vld [vmem:[%s1 + $0x15c] sm:$0xf]
    %v105 = vld [vmem:[%s1 + $0x160] sm:$0xf]
    %v106 = vld [vmem:[%s1 + $0x164] sm:$0xf]
    %v107 = vld [vmem:[%s1 + $0x168] sm:$0xf]
    %v108 = vld [vmem:[%s1 + $0x16c] sm:$0xf]
    %v109 = vld [vmem:[%s1 + $0x170] sm:$0xf]
    %v110 = vld [vmem:[%s1 + $0x174] sm:$0xf]
    %v111 = vld [vmem:[%s1 + $0x178] sm:$0xf]
    %v112 = vld [vmem:[%s1 + $0x17c] sm:$0xf]
    %v113 = vld [vmem:[%s1 + $0x180] sm:$0xf]
    %v114 = vld [vmem:[%s1 + $0x184] sm:$0xf]
    %v115 = vld [vmem:[%s1 + $0x188] sm:$0xf]
    %v116 = vld [vmem:[%s1 + $0x18c] sm:$0xf]
    %v117 = vld [vmem:[%s1 + $0x190] sm:$0xf]
    %v118 = vld [vmem:[%s1 + $0x194] sm:$0xf]
    %v119 = vld [vmem:[%s1 + $0x198] sm:$0xf]
    %v120 = vld [vmem:[%s1 + $0x19c] sm:$0xf]
    %v121 = vld [vmem:[%s1 + $0x1a0] sm:$0xf]
    %v122 = vld [vmem:[%s1 + $0x1a4] sm:$0xf]
    %v123 = vld [vmem:[%s1 + $0x1a8] sm:$0xf]
    %v124 = vld [vmem:[%s1 + $0x1ac] sm:$0xf]
    %v125 = vld [vmem:[%s1 + $0x1b0] sm:$0xf]
    %v126 = vld [vmem:[%s1 + $0x1b4] sm:$0xf]
    %v127 = vld [vmem:[%s1 + $0x1b8] sm:$0xf]
    %v128 = vld [vmem:[%s1 + $0x1bc] sm:$0xf]
    %v129 = vld [vmem:[%s1 + $0x1c0] sm:$0xf]
    %v130 = vld [vmem:[%s1 + $0x1c4] sm:$0xf]
    %v131 = vld [vmem:[%s1 + $0x1c8] sm:$0xf]
    %v132 = vld [vmem:[%s1 + $0x1cc] sm:$0xf]
    %v133 = vld [vmem:[%s1 + $0x1d0] sm:$0xf]
    %v134 = vld [vmem:[%s1 + $0x1d4] sm:$0xf]
    %v135 = vld [vmem:[%s1 + $0x1d8] sm:$0xf]
    %v136 = vld [vmem:[%s1 + $0x1dc] sm:$0xf]
    %v137 = vld [vmem:[%s1 + $0x1e0] sm:$0xf]
    %v138 = vld [vmem:[%s1 + $0x1e4] sm:$0xf]
    %v139 = vld [vmem:[%s1 + $0x1e8] sm:$0xf]
    %v140 = vld [vmem:[%s1 + $0x1ec] sm:$0xf]
    %v141 = vld [vmem:[%s1 + $0x1f0] sm:$0xf]
    %v142 = vld [vmem:[%s1 + $0x1f4] sm:$0xf]
    %v143 = vld [vmem:[%s1 + $0x1f8] sm:$0xf]
    %v144 = vld [vmem:[%s1 + $0x1fc] sm:$0xf]
    %v145 = vld [vmem:[%s2] sm:$0x1]
    %v147 = vlaneseq
    %v148 = vshrl.u32 %v147, 7
    %v149 = vsub.s32 0, %v148
    %v150 = vrot.slane %v145, %v149
    %v153 = vcombine.high %v16, %v16
    %v155 = vunpack.c.l.s4 1966171168
    %v156 = vunpack.c.0.s8 %v155
    %v157 = vlaneseq
    %v158 = vshrl.u32 %v157, 7
    %v159 = vsub.s32 %v156, %v158
    %v160 = vrot.slane %v16, %v159
    %v162 = vunpack.c.l.s4 1966171168
    %v163 = vunpack.c.0.s8 %v162
    %v164 = vlaneseq
    %v165 = vshrl.u32 %v164, 7
    %v166 = vsub.s32 %v163, %v165
    %v167 = vrot.slane %v153, %v166
    %v168 = vcombine.high %v160, %v160
    %v169 = vcombine.high %v167, %v167
    %v171 = vunpack.c.l.s4 1966171168
    %v172 = vunpack.c.0.s8 %v171
    %v173 = vlaneseq
    %v174 = vshrl.u32 %v173, 7
    %v175 = vsub.s32 %v172, %v174
    %v176 = vrot.slane %v160, %v175
    %v178 = vunpack.c.l.s4 1966171168
    %v179 = vunpack.c.0.s8 %v178
    %v180 = vlaneseq
    %v181 = vshrl.u32 %v180, 7
    %v182 = vsub.s32 %v179, %v181
    %v183 = vrot.slane %v167, %v182
    %v185 = vunpack.c.l.s4 1966171168
    %v186 = vunpack.c.0.s8 %v185
    %v187 = vlaneseq
    %v188 = vshrl.u32 %v187, 7
    %v189 = vsub.s32 %v186, %v188
    %v190 = vrot.slane %v168, %v189
    %v192 = vunpack.c.l.s4 1966171168
    %v193 = vunpack.c.0.s8 %v192
    %v194 = vlaneseq
    %v195 = vshrl.u32 %v194, 7
    %v196 = vsub.s32 %v193, %v195
    %v197 = vrot.slane %v169, %v196
    %v198 = vcombine.high %v176, %v176
    %v199 = vcombine.high %v183, %v183
    %v200 = vcombine.high %v190, %v190
    %v201 = vcombine.high %v197, %v197
    %v338 = vunpack.c.l.b16 %v17
    %v339 = vunpack.c.l.b16 %v18
    %v340 = vunpack.c.l.b16 %v19
    %v341 = vunpack.c.l.b16 %v20
    %v342 = vunpack.c.l.b16 %v21
    %v343 = vunpack.c.l.b16 %v22
    %v344 = vunpack.c.l.b16 %v23
    %v345 = vunpack.c.l.b16 %v24
    %v346 = vunpack.c.l.b16 %v25
    %v347 = vunpack.c.l.b16 %v26
    %v348 = vunpack.c.l.b16 %v27
    %v349 = vunpack.c.l.b16 %v28
    %v350 = vunpack.c.l.b16 %v29
    %v351 = vunpack.c.l.b16 %v30
    %v352 = vunpack.c.l.b16 %v31
    %v353 = vunpack.c.l.b16 %v32
    %v354 = vunpack.c.l.b16 %v33
    %v355 = vunpack.c.l.b16 %v34
    %v356 = vunpack.c.l.b16 %v35
    %v357 = vunpack.c.l.b16 %v36
    %v358 = vunpack.c.l.b16 %v37
    %v359 = vunpack.c.l.b16 %v38
    %v360 = vunpack.c.l.b16 %v39
    %v361 = vunpack.c.l.b16 %v40
    %v362 = vunpack.c.l.b16 %v41
    %v363 = vunpack.c.l.b16 %v42
    %v364 = vunpack.c.l.b16 %v43
    %v365 = vunpack.c.l.b16 %v44
    %v366 = vunpack.c.l.b16 %v45
    %v367 = vunpack.c.l.b16 %v46
    %v368 = vunpack.c.l.b16 %v47
    %v369 = vunpack.c.l.b16 %v48
    %v370 = vunpack.c.l.b16 %v49
    %v371 = vunpack.c.l.b16 %v50
    %v372 = vunpack.c.l.b16 %v51
    %v373 = vunpack.c.l.b16 %v52
    %v374 = vunpack.c.l.b16 %v53
    %v375 = vunpack.c.l.b16 %v54
    %v376 = vunpack.c.l.b16 %v55
    %v377 = vunpack.c.l.b16 %v56
    %v378 = vunpack.c.l.b16 %v57
    %v379 = vunpack.c.l.b16 %v58
    %v380 = vunpack.c.l.b16 %v59
    %v381 = vunpack.c.l.b16 %v60
    %v382 = vunpack.c.l.b16 %v61
    %v383 = vunpack.c.l.b16 %v62
    %v384 = vunpack.c.l.b16 %v63
    %v385 = vunpack.c.l.b16 %v64
    %v386 = vunpack.c.l.b16 %v65
    %v387 = vunpack.c.l.b16 %v66
    %v388 = vunpack.c.l.b16 %v67
    %v389 = vunpack.c.l.b16 %v68
    %v390 = vunpack.c.l.b16 %v69
    %v391 = vunpack.c.l.b16 %v70
    %v392 = vunpack.c.l.b16 %v71
    %v393 = vunpack.c.l.b16 %v72
    %v394 = vunpack.c.l.b16 %v73
    %v395 = vunpack.c.l.b16 %v74
    %v396 = vunpack.c.l.b16 %v75
    %v397 = vunpack.c.l.b16 %v76
    %v398 = vunpack.c.l.b16 %v77
    %v399 = vunpack.c.l.b16 %v78
    %v400 = vunpack.c.l.b16 %v79
    %v401 = vunpack.c.l.b16 %v80
    %v402 = vunpack.c.l.b16 %v81
    %v403 = vunpack.c.l.b16 %v82
    %v404 = vunpack.c.l.b16 %v83
    %v405 = vunpack.c.l.b16 %v84
    %v406 = vunpack.c.l.b16 %v85
    %v407 = vunpack.c.l.b16 %v86
    %v408 = vunpack.c.l.b16 %v87
    %v409 = vunpack.c.l.b16 %v88
    %v410 = vunpack.c.l.b16 %v89
    %v411 = vunpack.c.l.b16 %v90
    %v412 = vunpack.c.l.b16 %v91
    %v413 = vunpack.c.l.b16 %v92
    %v414 = vunpack.c.l.b16 %v93
    %v415 = vunpack.c.l.b16 %v94
    %v416 = vunpack.c.l.b16 %v95
    %v417 = vunpack.c.l.b16 %v96
    %v418 = vunpack.c.l.b16 %v97
    %v419 = vunpack.c.l.b16 %v98
    %v420 = vunpack.c.l.b16 %v99
    %v421 = vunpack.c.l.b16 %v100
    %v422 = vunpack.c.l.b16 %v101
    %v423 = vunpack.c.l.b16 %v102
    %v424 = vunpack.c.l.b16 %v103
    %v425 = vunpack.c.l.b16 %v104
    %v426 = vunpack.c.l.b16 %v105
    %v427 = vunpack.c.l.b16 %v106
    %v428 = vunpack.c.l.b16 %v107
    %v429 = vunpack.c.l.b16 %v108
    %v430 = vunpack.c.l.b16 %v109
    %v431 = vunpack.c.l.b16 %v110
    %v432 = vunpack.c.l.b16 %v111
    %v433 = vunpack.c.l.b16 %v112
    %v434 = vunpack.c.l.b16 %v113
    %v435 = vunpack.c.l.b16 %v114
    %v436 = vunpack.c.l.b16 %v115
    %v437 = vunpack.c.l.b16 %v116
    %v438 = vunpack.c.l.b16 %v117
    %v439 = vunpack.c.l.b16 %v118
    %v440 = vunpack.c.l.b16 %v119
    %v441 = vunpack.c.l.b16 %v120
    %v442 = vunpack.c.l.b16 %v121
    %v443 = vunpack.c.l.b16 %v122
    %v444 = vunpack.c.l.b16 %v123
    %v445 = vunpack.c.l.b16 %v124
    %v446 = vunpack.c.l.b16 %v125
    %v447 = vunpack.c.l.b16 %v126
    %v448 = vunpack.c.l.b16 %v127
    %v449 = vunpack.c.l.b16 %v128
    %v450 = vunpack.c.l.b16 %v129
    %v451 = vunpack.c.l.b16 %v130
    %v452 = vunpack.c.l.b16 %v131
    %v453 = vunpack.c.l.b16 %v132
    %v454 = vunpack.c.l.b16 %v133
    %v455 = vunpack.c.l.b16 %v134
    %v456 = vunpack.c.l.b16 %v135
    %v457 = vunpack.c.l.b16 %v136
    %v458 = vunpack.c.l.b16 %v137
    %v459 = vunpack.c.l.b16 %v138
    %v460 = vunpack.c.l.b16 %v139
    %v461 = vunpack.c.l.b16 %v140
    %v462 = vunpack.c.l.b16 %v141
    %v463 = vunpack.c.l.b16 %v142
    %v464 = vunpack.c.l.b16 %v143
    %v465 = vunpack.c.l.b16 %v144
    %v466 = vpack.c.b16 %v339, %v338
    %v467 = vpack.c.b16 %v341, %v340
    %v468 = vpack.c.b16 %v343, %v342
    %v469 = vpack.c.b16 %v345, %v344
    %v470 = vpack.c.b16 %v347, %v346
    %v471 = vpack.c.b16 %v349, %v348
    %v472 = vpack.c.b16 %v351, %v350
    %v473 = vpack.c.b16 %v353, %v352
    %v474 = vpack.c.b16 %v355, %v354
    %v475 = vpack.c.b16 %v357, %v356
    %v476 = vpack.c.b16 %v359, %v358
    %v477 = vpack.c.b16 %v361, %v360
    %v478 = vpack.c.b16 %v363, %v362
    %v479 = vpack.c.b16 %v365, %v364
    %v480 = vpack.c.b16 %v367, %v366
    %v481 = vpack.c.b16 %v369, %v368
    %v482 = vpack.c.b16 %v371, %v370
    %v483 = vpack.c.b16 %v373, %v372
    %v484 = vpack.c.b16 %v375, %v374
    %v485 = vpack.c.b16 %v377, %v376
    %v486 = vpack.c.b16 %v379, %v378
    %v487 = vpack.c.b16 %v381, %v380
    %v488 = vpack.c.b16 %v383, %v382
    %v489 = vpack.c.b16 %v385, %v384
    %v490 = vpack.c.b16 %v387, %v386
    %v491 = vpack.c.b16 %v389, %v388
    %v492 = vpack.c.b16 %v391, %v390
    %v493 = vpack.c.b16 %v393, %v392
    %v494 = vpack.c.b16 %v395, %v394
    %v495 = vpack.c.b16 %v397, %v396
    %v496 = vpack.c.b16 %v399, %v398
    %v497 = vpack.c.b16 %v401, %v400
    %v498 = vpack.c.b16 %v403, %v402
    %v499 = vpack.c.b16 %v405, %v404
    %v500 = vpack.c.b16 %v407, %v406
    %v501 = vpack.c.b16 %v409, %v408
    %v502 = vpack.c.b16 %v411, %v410
    %v503 = vpack.c.b16 %v413, %v412
    %v504 = vpack.c.b16 %v415, %v414
    %v505 = vpack.c.b16 %v417, %v416
    %v506 = vpack.c.b16 %v419, %v418
    %v507 = vpack.c.b16 %v421, %v420
    %v508 = vpack.c.b16 %v423, %v422
    %v509 = vpack.c.b16 %v425, %v424
    %v510 = vpack.c.b16 %v427, %v426
    %v511 = vpack.c.b16 %v429, %v428
    %v512 = vpack.c.b16 %v431, %v430
    %v513 = vpack.c.b16 %v433, %v432
    %v514 = vpack.c.b16 %v435, %v434
    %v515 = vpack.c.b16 %v437, %v436
    %v516 = vpack.c.b16 %v439, %v438
    %v517 = vpack.c.b16 %v441, %v440
    %v518 = vpack.c.b16 %v443, %v442
    %v519 = vpack.c.b16 %v445, %v444
    %v520 = vpack.c.b16 %v447, %v446
    %v521 = vpack.c.b16 %v449, %v448
    %v522 = vpack.c.b16 %v451, %v450
    %v523 = vpack.c.b16 %v453, %v452
    %v524 = vpack.c.b16 %v455, %v454
    %v525 = vpack.c.b16 %v457, %v456
    %v526 = vpack.c.b16 %v459, %v458
    %v527 = vpack.c.b16 %v461, %v460
    %v528 = vpack.c.b16 %v463, %v462
    %v529 = vpack.c.b16 %v465, %v464
    %594 = vmatprep.subr.bf16.mxu0 0
    %595 = vmatpush1.bf16.msra.mxu0 %v466
    %596 = vmatprep.subr.bf16.mxu0 0
    %597 = vmatpush1.bf16.msra.mxu0 %v467
    %598 = vmatprep.subr.bf16.mxu0 0
    %599 = vmatpush1.bf16.msra.mxu0 %v468
    %600 = vmatprep.subr.bf16.mxu0 0
    %601 = vmatpush1.bf16.msra.mxu0 %v469
    %602 = vmatprep.subr.bf16.mxu0 0
    %603 = vmatpush1.bf16.msra.mxu0 %v470
    %604 = vmatprep.subr.bf16.mxu0 0
    %605 = vmatpush1.bf16.msra.mxu0 %v471
    %606 = vmatprep.subr.bf16.mxu0 0
    %607 = vmatpush1.bf16.msra.mxu0 %v472
    %608 = vmatprep.subr.bf16.mxu0 0
    %609 = vmatpush1.bf16.msra.mxu0 %v473
    %610 = vmatprep.subr.bf16.mxu0 0
    %611 = vmatpush1.bf16.msra.mxu0 %v474
    %612 = vmatprep.subr.bf16.mxu0 0
    %613 = vmatpush1.bf16.msra.mxu0 %v475
    %614 = vmatprep.subr.bf16.mxu0 0
    %615 = vmatpush1.bf16.msra.mxu0 %v476
    %616 = vmatprep.subr.bf16.mxu0 0
    %617 = vmatpush1.bf16.msra.mxu0 %v477
    %618 = vmatprep.subr.bf16.mxu0 0
    %619 = vmatpush1.bf16.msra.mxu0 %v478
    %620 = vmatprep.subr.bf16.mxu0 0
    %621 = vmatpush1.bf16.msra.mxu0 %v479
    %622 = vmatprep.subr.bf16.mxu0 0
    %623 = vmatpush1.bf16.msra.mxu0 %v480
    %624 = vmatprep.subr.bf16.mxu0 0
    %625 = vmatpush1.bf16.msra.mxu0 %v481
    %626 = vmatprep.mubr.bf16.mxu0 %v190
    %627 = vmatmul.mubr.bf16.gmra.mrb[0].mxu0 %v176
    %v628 = vpop.f32.mrb[0].mxu0
    %v629 = vadd.f32 %v150, %v628
    %v630 = vpop.f32.mrb[0].mxu0
    %v631 = vpop.f32.mrb[0].mxu0
    %v632 = vpop.f32.mrb[0].mxu0
    %633 = vdwg.mxu0
    %634 = vmatprep.subr.bf16.mxu0 0
    %635 = vmatpush1.bf16.msra.mxu0 %v482
    %636 = vmatprep.subr.bf16.mxu0 0
    %637 = vmatpush1.bf16.msra.mxu0 %v483
    %638 = vmatprep.subr.bf16.mxu0 0
    %639 = vmatpush1.bf16.msra.mxu0 %v484
    %640 = vmatprep.subr.bf16.mxu0 0
    %641 = vmatpush1.bf16.msra.mxu0 %v485
    %642 = vmatprep.subr.bf16.mxu0 0
    %643 = vmatpush1.bf16.msra.mxu0 %v486
    %644 = vmatprep.subr.bf16.mxu0 0
    %645 = vmatpush1.bf16.msra.mxu0 %v487
    %646 = vmatprep.subr.bf16.mxu0 0
    %647 = vmatpush1.bf16.msra.mxu0 %v488
    %648 = vmatprep.subr.bf16.mxu0 0
    %649 = vmatpush1.bf16.msra.mxu0 %v489
    %650 = vmatprep.subr.bf16.mxu0 0
    %651 = vmatpush1.bf16.msra.mxu0 %v490
    %652 = vmatprep.subr.bf16.mxu0 0
    %653 = vmatpush1.bf16.msra.mxu0 %v491
    %654 = vmatprep.subr.bf16.mxu0 0
    %655 = vmatpush1.bf16.msra.mxu0 %v492
    %656 = vmatprep.subr.bf16.mxu0 0
    %657 = vmatpush1.bf16.msra.mxu0 %v493
    %658 = vmatprep.subr.bf16.mxu0 0
    %659 = vmatpush1.bf16.msra.mxu0 %v494
    %660 = vmatprep.subr.bf16.mxu0 0
    %661 = vmatpush1.bf16.msra.mxu0 %v495
    %662 = vmatprep.subr.bf16.mxu0 0
    %663 = vmatpush1.bf16.msra.mxu0 %v496
    %664 = vmatprep.subr.bf16.mxu0 0
    %665 = vmatpush1.bf16.msra.mxu0 %v497
    %666 = vmatprep.mubr.bf16.mxu0 %v200
    %667 = vmatmul.mubr.bf16.gmra.mrb[0].mxu0 %v198
    %v668 = vpop.f32.mrb[0].mxu0
    %v669 = vadd.f32 %v629, %v668
    %v670 = vpop.f32.mrb[0].mxu0
    %v671 = vpop.f32.mrb[0].mxu0
    %v672 = vpop.f32.mrb[0].mxu0
    %673 = vdwg.mxu0
    %674 = vmatprep.subr.bf16.mxu0 0
    %675 = vmatpush1.bf16.msra.mxu0 %v498
    %676 = vmatprep.subr.bf16.mxu0 0
    %677 = vmatpush1.bf16.msra.mxu0 %v499
    %678 = vmatprep.subr.bf16.mxu0 0
    %679 = vmatpush1.bf16.msra.mxu0 %v500
    %680 = vmatprep.subr.bf16.mxu0 0
    %681 = vmatpush1.bf16.msra.mxu0 %v501
    %682 = vmatprep.subr.bf16.mxu0 0
    %683 = vmatpush1.bf16.msra.mxu0 %v502
    %684 = vmatprep.subr.bf16.mxu0 0
    %685 = vmatpush1.bf16.msra.mxu0 %v503
    %686 = vmatprep.subr.bf16.mxu0 0
    %687 = vmatpush1.bf16.msra.mxu0 %v504
    %688 = vmatprep.subr.bf16.mxu0 0
    %689 = vmatpush1.bf16.msra.mxu0 %v505
    %690 = vmatprep.subr.bf16.mxu0 0
    %691 = vmatpush1.bf16.msra.mxu0 %v506
    %692 = vmatprep.subr.bf16.mxu0 0
    %693 = vmatpush1.bf16.msra.mxu0 %v507
    %694 = vmatprep.subr.bf16.mxu0 0
    %695 = vmatpush1.bf16.msra.mxu0 %v508
    %696 = vmatprep.subr.bf16.mxu0 0
    %697 = vmatpush1.bf16.msra.mxu0 %v509
    %698 = vmatprep.subr.bf16.mxu0 0
    %699 = vmatpush1.bf16.msra.mxu0 %v510
    %700 = vmatprep.subr.bf16.mxu0 0
    %701 = vmatpush1.bf16.msra.mxu0 %v511
    %702 = vmatprep.subr.bf16.mxu0 0
    %703 = vmatpush1.bf16.msra.mxu0 %v512
    %704 = vmatprep.subr.bf16.mxu0 0
    %705 = vmatpush1.bf16.msra.mxu0 %v513
    %706 = vmatprep.mubr.bf16.mxu0 %v197
    %707 = vmatmul.mubr.bf16.gmra.mrb[0].mxu0 %v183
    %v708 = vpop.f32.mrb[0].mxu0
    %v709 = vadd.f32 %v669, %v708
    %v710 = vpop.f32.mrb[0].mxu0
    %v711 = vpop.f32.mrb[0].mxu0
    %v712 = vpop.f32.mrb[0].mxu0
    %713 = vdwg.mxu0
    %714 = vmatprep.subr.bf16.mxu0 0
    %715 = vmatpush1.bf16.msra.mxu0 %v514
    %716 = vmatprep.subr.bf16.mxu0 0
    %717 = vmatpush1.bf16.msra.mxu0 %v515
    %718 = vmatprep.subr.bf16.mxu0 0
    %719 = vmatpush1.bf16.msra.mxu0 %v516
    %720 = vmatprep.subr.bf16.mxu0 0
    %721 = vmatpush1.bf16.msra.mxu0 %v517
    %722 = vmatprep.subr.bf16.mxu0 0
    %723 = vmatpush1.bf16.msra.mxu0 %v518
    %724 = vmatprep.subr.bf16.mxu0 0
    %725 = vmatpush1.bf16.msra.mxu0 %v519
    %726 = vmatprep.subr.bf16.mxu0 0
    %727 = vmatpush1.bf16.msra.mxu0 %v520
    %728 = vmatprep.subr.bf16.mxu0 0
    %729 = vmatpush1.bf16.msra.mxu0 %v521
    %730 = vmatprep.subr.bf16.mxu0 0
    %731 = vmatpush1.bf16.msra.mxu0 %v522
    %732 = vmatprep.subr.bf16.mxu0 0
    %733 = vmatpush1.bf16.msra.mxu0 %v523
    %734 = vmatprep.subr.bf16.mxu0 0
    %735 = vmatpush1.bf16.msra.mxu0 %v524
    %736 = vmatprep.subr.bf16.mxu0 0
    %737 = vmatpush1.bf16.msra.mxu0 %v525
    %738 = vmatprep.subr.bf16.mxu0 0
    %739 = vmatpush1.bf16.msra.mxu0 %v526
    %740 = vmatprep.subr.bf16.mxu0 0
    %741 = vmatpush1.bf16.msra.mxu0 %v527
    %742 = vmatprep.subr.bf16.mxu0 0
    %743 = vmatpush1.bf16.msra.mxu0 %v528
    %744 = vmatprep.subr.bf16.mxu0 0
    %745 = vmatpush1.bf16.msra.mxu0 %v529
    %746 = vmatprep.mubr.bf16.mxu0 %v201
    %747 = vmatmul.mubr.bf16.gmra.mrb[0].mxu0 %v199
    %v748 = vpop.f32.mrb[0].mxu0
    %v749 = vadd.f32 %v709, %v748
    %v750 = vpop.f32.mrb[0].mxu0
    %v751 = vpop.f32.mrb[0].mxu0
    %v752 = vpop.f32.mrb[0].mxu0
    %753 = vdwg.mxu0
    %755 = vset.pattern.permute.xlu0 6
    %756 = vperm.xlu0 %755, %v749
    %v757 = vpop.permute.xlu0 %756
    %v759 = vadd.f32 %v757, %v749
    %vm760 = vcmask 41984
    %v761 = vsel %vm760, %v749, 0.0
    %762 = vadd.xlane.f32.xlu0 %v761
    %v763 = vpop.xlane.xlu0 %762
    %v764 = vrot.slane %v763, 4
    %v765 = vadd.f32 %v763, %v764
    %v766 = vrot.slane %v765, 2
    %v767 = vadd.f32 %v765, %v766
    %v768 = vrot.slane %v767, 1
    %v769 = vadd.f32 %v767, %v768
    %s770 = vtos %v769
    %v771 = vrcp.pop 12.0
    %s772 = vtos %v771
    %s773 = smul.f32 %s770, %s772
    %v774 = vstv %s773
    %v775 = vsub.f32 %v759, %v774
    %776 = vst.msk [vmem:[#allocation2] sm:$0x3] %vm760, %v775
    // Predicated region
    $region14: #{dqn_conv_duel_forward.9} parent=1 // pred_check
      _
    $region15: #{dqn_conv_duel_forward.9} parent=1 // pred_check_branch
      %778 = sbr.rel (0) target = $region17
    $region16: #{dqn_conv_duel_forward.9} parent=1 // pred_region
      %s780 = ssub.s32 32, 32
      %781 = vsyncadd [#allocation3], %s780
      %s783 = sshll.u32 [#allocation2], 4
      %s784 = int_to_ptr.vmem [resolvable:$true] %s783
      %786 = dma.vmem_to_hbm [thread:$0]  %s784, 32, %s3, [#allocation3]
    $region17: #{dqn_conv_duel_forward.9} parent=1 // pred_fallthru
      _
    // Predicated region
    $region18: #{dqn_conv_duel_forward.9} parent=1 // pred_check
      _
    $region19: #{dqn_conv_duel_forward.9} parent=1 // pred_check_branch
      %788 = sbr.rel (0) target = $region21
    $region20: #{dqn_conv_duel_forward.9} parent=1 // pred_region
      %789 = dma.done [#allocation3], 32
    $region21: #{dqn_conv_duel_forward.9} parent=1 // pred_fallthru
      _
    %790 = vsyncpa [#allocation3], 1

</llo_original>
